<compile_context>
chip_gen: v6e
topology: v6e:2x2x1
jax: 0.10.0
libtpu: 0.0.40
codegen_flags: <defaults>
</compile_context>

<pallas_src>
import numpy as np

import jax
import jax.numpy as jnp
from jax import lax
from jax.experimental import pallas as pl
from jax.experimental.pallas import tpu as pltpu


def _erf(x):
    # Abramowitz & Stegun 7.1.26 polynomial approximation (|err| <= 1.5e-7).
    a1, a2, a3, a4, a5 = 0.254829592, -0.284496736, 1.421413741, -1.453152027, 1.061405429
    p = 0.3275911
    sign = jnp.where(x >= 0.0, 1.0, -1.0)
    ax = jnp.abs(x)
    t = 1.0 / (1.0 + p * ax)
    poly = ((((a5 * t + a4) * t + a3) * t + a2) * t + a1) * t
    return sign * (1.0 - poly * jnp.exp(-ax * ax))


def _gelu_exact(x):
    return 0.5 * x * (1.0 + _erf(x * 0.7071067811865475))


def _block_diag(w, n):
    """Replicate a (r,c) matrix n times along the diagonal -> (n*r, n*c)."""
    r, c = w.shape
    out = np.zeros((n * r, n * c), np.float32)
    for i in range(n):
        out[i * r:(i + 1) * r, i * c:(i + 1) * c] = w
    return out


def _build_pool_matrix01(H, W, k=7):
    """Exact 0/1 pooling-sum matrix (Np, N); the 1/k^2 scale is folded elsewhere."""
    Hp, Wp = H // k, W // k
    P = np.zeros((Hp * Wp, H * W), np.float32)
    for i in range(Hp):
        for j in range(Wp):
            for di in range(k):
                for dj in range(k):
                    P[i * Wp + j, (i * k + di) * W + (j * k + dj)] = 1.0
    return P


def _make_kernel(B, C, num_heads, Np):
    bf16 = jnp.bfloat16
    BC = B * C
    n_copies = B * num_heads   # number of (batch, head) groups

    def kernel(x_ref, pmat_ref, wq_ref, bq_ref, wc_ref, bc_ref,
               g_ref, beta_ref, wkv_ref, bkv_ref, gavg_ref,
               hmask_ref, gsum_ref, out_ref):
        xb = x_ref[...].astype(bf16)                                    # (N, BC)

        # ---- q projection (attention scale pre-folded into wq / bq on host) ----
        q = jnp.dot(xb, wq_ref[...],
                    preferred_element_type=jnp.float32) + bq_ref[...]   # (N, BC) f32

        # ---- downsample branch --------------------------------------------------
        # AvgPool2d(7): exact 0/1 pooling-sum matmul; the 1/49 scale lives in wc.
        xp = jnp.dot(pmat_ref[...], xb,
                     preferred_element_type=jnp.float32)                # (Np, BC)
        # Conv2d(C, C, 1) == per-batch block-diagonal channel matmul (weight /49)
        xd = jnp.dot(xp.astype(bf16), wc_ref[...],
                     preferred_element_type=jnp.float32) + bc_ref[...]  # (Np, BC)
        # LayerNorm over each batch's 64 channels (eps = 1e-5); per-batch stats via
        # tiny f32 matmuls with a block-(1/C) group-average matrix.
        mu = jnp.dot(xd, gavg_ref[...], preferred_element_type=jnp.float32)
        ctr = xd - mu
        var = jnp.dot(ctr * ctr, gavg_ref[...], preferred_element_type=jnp.float32)
        xn = ctr * lax.rsqrt(var + 1e-5) * g_ref[...] + beta_ref[...]
        xg = _gelu_exact(xn).astype(bf16)                                # (Np, BC)

        # ---- fused k/v projection: one (Np, BC) x (BC, 2*BC) matmul -------------
        kv = jnp.dot(xg, wkv_ref[...],
                     preferred_element_type=jnp.float32) + bkv_ref[...]  # (Np, 2BC)
        k = kv[:, :BC]          # static slice at the 128-lane vreg boundary
        v = kv[:, BC:]

        # ---- fuse all (batch, head) groups into block-diagonal K/V slabs --------
        # row r = g*Np + p (g = b*H + h) holds k[p]/v[p], zeroed outside batch b's
        # head-h channel block.  The same mask also kills cross-batch score terms.
        hmask = hmask_ref[...]                                           # 0/1 f32
        k_bd = (jnp.concatenate([k] * n_copies, axis=0) * hmask).astype(bf16)
        v_bd = (jnp.concatenate([v] * n_copies, axis=0) * hmask).astype(bf16)

        # ---- scores for ALL batches & heads in one MXU issue --------------------
        s = lax.dot_general(q.astype(bf16), k_bd, (((1,), (1,)), ((), ())),
                            preferred_element_type=jnp.float32)          # (N, G*Np)

        # Row max is a per-row constant -> cancels inside every group's softmax.
        s = s - jnp.max(s, axis=-1, keepdims=True)
        e = jnp.exp(s)
        # per-(batch,head) denominator via a bf16 block-ones matmul (gsum is exact 0/1)
        den = jnp.dot(e.astype(bf16), gsum_ref[...],
                      preferred_element_type=jnp.float32)
        p = e * pl.reciprocal(den, approx=True)

        # ---- output for ALL batches & heads in one MXU issue; columns already in
        #      (batch, MergeHeads-channel) order -> one unmasked 128-lane store.
        o = jnp.dot(p.astype(bf16), v_bd, preferred_element_type=jnp.float32)
        out_ref[...] = o.astype(out_ref.dtype)

    return kernel


def attention_forward(x, H, W, params, num_heads):
    B, N, C = x.shape
    assert N == H * W and C % num_heads == 0
    hd = C // num_heads
    scale = float(hd) ** -0.5
    kpool = 7
    Hp, Wp = H // kpool, W // kpool
    Np = Hp * Wp
    BC = B * C
    G = B * num_heads
    GNp = G * Np

    bf16 = jnp.bfloat16

    # ---- host-side parameter prep (one-time constant folding) -------------------
    q_w = np.asarray(params["q_w"], np.float32)          # (out, in)
    q_b = np.asarray(params["q_b"], np.float32)
    conv_w = np.asarray(params["conv_w"], np.float32).reshape(C, C)   # (out, in)
    conv_b = np.asarray(params["conv_b"], np.float32)
    ln_g = np.asarray(params["ln_g"], np.float32)
    ln_b = np.asarray(params["ln_b"], np.float32)
    kv_w = np.asarray(params["kv_w"], np.float32)        # (2C, C)
    kv_b = np.asarray(params["kv_b"], np.float32)

    wq = q_w.T * scale                                   # scale folded in
    bq = q_b * scale
    wc = conv_w.T / (kpool * kpool)                      # AvgPool scale folded in
    wk = kv_w[:C].T
    wv = kv_w[C:].T
    bk = kv_b[:C]
    bv = kv_b[C:]

    # per-batch block-diagonal weights, pre-cast to bf16 (MXU operands)
    wq_bd = jnp.asarray(_block_diag(wq, B), bf16)                          # (BC, BC)
    wc_bd = jnp.asarray(_block_diag(wc, B), bf16)                          # (BC, BC)
    wkv_bd = jnp.asarray(np.concatenate([_block_diag(wk, B),
                                         _block_diag(wv, B)], axis=1), bf16)  # (BC, 2BC)

    # biases / LN params replicated per batch (f32)
    bq_bd = jnp.asarray(np.tile(bq, B).reshape(1, BC), jnp.float32)
    bc_bd = jnp.asarray(np.tile(conv_b, B).reshape(1, BC), jnp.float32)
    g_bd = jnp.asarray(np.tile(ln_g, B).reshape(1, BC), jnp.float32)
    beta_bd = jnp.asarray(np.tile(ln_b, B).reshape(1, BC), jnp.float32)
    bkv_bd = jnp.asarray(np.concatenate([np.tile(bk, B), np.tile(bv, B)])
                         .reshape(1, 2 * BC), jnp.float32)

    # exact 0/1 pooling-sum matrix (bf16-exact)
    pmat01 = jnp.asarray(_build_pool_matrix01(H, W, kpool), bf16)          # (Np, N)

    # per-batch LayerNorm group-average matrix (entries 1/C, f32)
    lane = np.arange(BC)
    gavg = (lane[:, None] // C == lane[None, :] // C).astype(np.float32) / C
    gavg = jnp.asarray(gavg)                                               # (BC, BC)

    # static structure matrices for the fused (batch, head) formulation
    r = np.arange(GNp)
    rb = (r // Np) // num_heads          # batch of slab row
    rh = (r // Np) % num_heads           # head of slab row
    cb = lane // C                       # batch of lane
    ch = (lane % C) // hd                # head of lane
    hmask = ((rb[:, None] == cb[None, :]) &
             (rh[:, None] == ch[None, :])).astype(np.float32)              # (GNp, BC)
    hmask = jnp.asarray(hmask)
    gsum = (r[:, None] // Np == r[None, :] // Np).astype(np.float32)       # (GNp, GNp)
    gsum = jnp.asarray(gsum, bf16)

    # fold batch into lanes: (B, N, C) -> (N, B*C)
    x_packed = jnp.transpose(x, (1, 0, 2)).reshape(N, BC)

    kernel = _make_kernel(B, C, num_heads, Np)

    out = pl.pallas_call(
        kernel,
        out_shape=jax.ShapeDtypeStruct((N, BC), jnp.float32),
        grid=(1,),
        in_specs=[
            pl.BlockSpec((N, BC), lambda i: (0, 0)),        # x packed (f32)
            pl.BlockSpec((Np, N), lambda i: (0, 0)),        # 0/1 pooling matrix (bf16)
            pl.BlockSpec((BC, BC), lambda i: (0, 0)),       # Wq block-diag (bf16, scaled)
            pl.BlockSpec((1, BC), lambda i: (0, 0)),        # bq (scaled)
            pl.BlockSpec((BC, BC), lambda i: (0, 0)),       # Wconv block-diag (bf16, /49)
            pl.BlockSpec((1, BC), lambda i: (0, 0)),        # bconv
            pl.BlockSpec((1, BC), lambda i: (0, 0)),        # ln gamma
            pl.BlockSpec((1, BC), lambda i: (0, 0)),        # ln beta
            pl.BlockSpec((BC, 2 * BC), lambda i: (0, 0)),   # Wkv block-diag (bf16)
            pl.BlockSpec((1, 2 * BC), lambda i: (0, 0)),    # bkv
            pl.BlockSpec((BC, BC), lambda i: (0, 0)),       # LN group-average (f32)
            pl.BlockSpec((GNp, BC), lambda i: (0, 0)),      # batch/head 0-1 mask
            pl.BlockSpec((GNp, GNp), lambda i: (0, 0)),     # block-ones group-sum (bf16)
        ],
        out_specs=pl.BlockSpec((N, BC), lambda i: (0, 0)),
        compiler_params=pltpu.CompilerParams(dimension_semantics=("arbitrary",)),
    )(x_packed, pmat01, wq_bd, bq_bd, wc_bd, bc_bd, g_bd, beta_bd,
      wkv_bd, bkv_bd, gavg, hmask, gsum)

    # unpack lanes back to (B, N, C)
    return out.reshape(N, B, C).transpose(1, 0, 2)


def reference_forward(x, H, W, params, num_heads):
    """Plain-JAX f32 mirror of the PyTorch forward (for sanity checking)."""
    B, N, C = x.shape
    hd = C // num_heads
    scale = float(hd) ** -0.5
    q = x @ params["q_w"].T + params["q_b"]
    q = q.reshape(B, N, num_heads, hd).transpose(0, 2, 1, 3) * scale
    xi = x.transpose(0, 2, 1).reshape(B, C, H, W)
    Hp, Wp = H // 7, W // 7
    xi = xi[:, :, :Hp * 7, :Wp * 7].reshape(B, C, Hp, 7, Wp, 7).mean(axis=(3, 5))
    xi = jnp.einsum("oi,bihw->bohw", params["conv_w"].reshape(C, C), xi) \
        + params["conv_b"][None, :, None, None]
    xt = xi.reshape(B, C, Hp * Wp).transpose(0, 2, 1)                  # Patch2Token
    mu = xt.mean(-1, keepdims=True)
    var = ((xt - mu) ** 2).mean(-1, keepdims=True)
    xt = (xt - mu) / jnp.sqrt(var + 1e-5) * params["ln_g"] + params["ln_b"]
    xt = jax.nn.gelu(xt, approximate=False)
    kv = xt @ params["kv_w"].T + params["kv_b"]
    kv = kv.reshape(B, Hp * Wp, 2, num_heads, hd).transpose(2, 0, 3, 1, 4)
    k, v = kv[0], kv[1]
    attn = q @ jnp.swapaxes(k, -2, -1)
    attn = jax.nn.softmax(attn, axis=-1)
    o = attn @ v
    return o.transpose(0, 2, 1, 3).reshape(B, N, C)


if __name__ == "__main__":
    B, C, num_heads, H, W = 2, 64, 8, 14, 14
    N = H * W

    key = jax.random.PRNGKey(0)
    ks = jax.random.split(key, 8)
    std = 0.05
    params = {
        "q_w": jax.random.normal(ks[0], (C, C), jnp.float32) * std,        # (out, in)
        "q_b": jax.random.normal(ks[1], (C,), jnp.float32) * std,
        "kv_w": jax.random.normal(ks[2], (2 * C, C), jnp.float32) * std,   # (out, in)
        "kv_b": jax.random.normal(ks[3], (2 * C,), jnp.float32) * std,
        "conv_w": jax.random.normal(ks[4], (C, C, 1, 1), jnp.float32) * std,
        "conv_b": jax.random.normal(ks[5], (C,), jnp.float32) * std,
        "ln_g": jnp.ones((C,), jnp.float32),
        "ln_b": jnp.zeros((C,), jnp.float32),
        # self.proj / proj_drop exist in __init__ but are never applied in forward.
        "proj_w": jax.random.normal(ks[6], (C, C), jnp.float32) * std,
    }
    x = jax.random.normal(ks[7], (B, N, C), jnp.float32)

    out = attention_forward(x, H, W, params, num_heads)
    out = jax.block_until_ready(out)

    ref = reference_forward(x, H, W, params, num_heads)
    np.testing.assert_allclose(np.asarray(out), np.asarray(ref), atol=2e-2, rtol=2e-2)

    print("KERNEL_OK")
</pallas_src>

<mosaic_0001>
module attributes {stable_mosaic.version = 11 : i64} {
  func.func @kernel(%arg0: i32, %arg1: memref<196x128xf32, #tpu.memory_space<vmem>>, %arg2: memref<4x196xbf16, #tpu.memory_space<vmem>>, %arg3: memref<128x128xbf16, #tpu.memory_space<vmem>>, %arg4: memref<1x128xf32, #tpu.memory_space<vmem>>, %arg5: memref<128x128xbf16, #tpu.memory_space<vmem>>, %arg6: memref<1x128xf32, #tpu.memory_space<vmem>>, %arg7: memref<1x128xf32, #tpu.memory_space<vmem>>, %arg8: memref<1x128xf32, #tpu.memory_space<vmem>>, %arg9: memref<128x256xbf16, #tpu.memory_space<vmem>>, %arg10: memref<1x256xf32, #tpu.memory_space<vmem>>, %arg11: memref<128x128xf32, #tpu.memory_space<vmem>>, %arg12: memref<64x128xf32, #tpu.memory_space<vmem>>, %arg13: memref<64x64xbf16, #tpu.memory_space<vmem>>, %arg14: memref<196x128xf32, #tpu.memory_space<vmem>>) attributes {dimension_semantics = [#tpu.dimension_semantics<arbitrary>], iteration_bounds = array<i64: 1>, scalar_prefetch = 0 : i64, scratch_operands = 0 : i64, tpu.core_type = #tpu.core_type<tc>, window_params = [{pipeline_mode = #tpu.pipeline_mode<synchronous>, transform_indices = @transform_0, window_bounds = array<i64: 196, 128>}, {pipeline_mode = #tpu.pipeline_mode<synchronous>, transform_indices = @transform_1, window_bounds = array<i64: 4, 196>}, {pipeline_mode = #tpu.pipeline_mode<synchronous>, transform_indices = @transform_2, window_bounds = array<i64: 128, 128>}, {pipeline_mode = #tpu.pipeline_mode<synchronous>, transform_indices = @transform_3, window_bounds = array<i64: 1, 128>}, {pipeline_mode = #tpu.pipeline_mode<synchronous>, transform_indices = @transform_4, window_bounds = array<i64: 128, 128>}, {pipeline_mode = #tpu.pipeline_mode<synchronous>, transform_indices = @transform_5, window_bounds = array<i64: 1, 128>}, {pipeline_mode = #tpu.pipeline_mode<synchronous>, transform_indices = @transform_6, window_bounds = array<i64: 1, 128>}, {pipeline_mode = #tpu.pipeline_mode<synchronous>, transform_indices = @transform_7, window_bounds = array<i64: 1, 128>}, {pipeline_mode = #tpu.pipeline_mode<synchronous>, transform_indices = @transform_8, window_bounds = array<i64: 128, 256>}, {pipeline_mode = #tpu.pipeline_mode<synchronous>, transform_indices = @transform_9, window_bounds = array<i64: 1, 256>}, {pipeline_mode = #tpu.pipeline_mode<synchronous>, transform_indices = @transform_10, window_bounds = array<i64: 128, 128>}, {pipeline_mode = #tpu.pipeline_mode<synchronous>, transform_indices = @transform_11, window_bounds = array<i64: 64, 128>}, {pipeline_mode = #tpu.pipeline_mode<synchronous>, transform_indices = @transform_12, window_bounds = array<i64: 64, 64>}, {pipeline_mode = #tpu.pipeline_mode<synchronous>, transform_indices = @transform_13, window_bounds = array<i64: 196, 128>}]} {
    %c0 = arith.constant 0 : index
    %c0_0 = arith.constant 0 : index
    %0 = vector.load %arg1[%c0, %c0_0] : memref<196x128xf32, #tpu.memory_space<vmem>>, vector<196x128xf32>
    %1 = arith.truncf %0 : vector<196x128xf32> to vector<196x128xbf16>
    %c0_1 = arith.constant 0 : index
    %c0_2 = arith.constant 0 : index
    %2 = vector.load %arg3[%c0_1, %c0_2] : memref<128x128xbf16, #tpu.memory_space<vmem>>, vector<128x128xbf16>
    %cst = arith.constant dense<0.000000e+00> : vector<196x128xf32>
    %3 = tpu.matmul %1, %2, %cst {dimension_numbers = #tpu.dot_dimension_numbers<[1], [0], [0], [1], [0, 0, 1, 1], [], []>} : vector<196x128xbf16>, vector<128x128xbf16>, vector<196x128xf32> -> vector<196x128xf32>
    %c0_3 = arith.constant 0 : index
    %c0_4 = arith.constant 0 : index
    %4 = vector.load %arg4[%c0_3, %c0_4] : memref<1x128xf32, #tpu.memory_space<vmem>>, vector<1x128xf32>
    %5 = vector.broadcast %4 : vector<1x128xf32> to vector<196x128xf32>
    %6 = arith.addf %3, %5 : vector<196x128xf32>
    %c0_5 = arith.constant 0 : index
    %c0_6 = arith.constant 0 : index
    %7 = vector.load %arg2[%c0_5, %c0_6] : memref<4x196xbf16, #tpu.memory_space<vmem>>, vector<4x196xbf16>
    %cst_7 = arith.constant dense<0.000000e+00> : vector<4x128xf32>
    %8 = tpu.matmul %7, %1, %cst_7 {dimension_numbers = #tpu.dot_dimension_numbers<[1], [0], [0], [1], [0, 0, 1, 1], [], []>} : vector<4x196xbf16>, vector<196x128xbf16>, vector<4x128xf32> -> vector<4x128xf32>
    %9 = arith.truncf %8 : vector<4x128xf32> to vector<4x128xbf16>
    %c0_8 = arith.constant 0 : index
    %c0_9 = arith.constant 0 : index
    %10 = vector.load %arg5[%c0_8, %c0_9] : memref<128x128xbf16, #tpu.memory_space<vmem>>, vector<128x128xbf16>
    %cst_10 = arith.constant dense<0.000000e+00> : vector<4x128xf32>
    %11 = tpu.matmul %9, %10, %cst_10 {dimension_numbers = #tpu.dot_dimension_numbers<[1], [0], [0], [1], [0, 0, 1, 1], [], []>} : vector<4x128xbf16>, vector<128x128xbf16>, vector<4x128xf32> -> vector<4x128xf32>
    %c0_11 = arith.constant 0 : index
    %c0_12 = arith.constant 0 : index
    %12 = vector.load %arg6[%c0_11, %c0_12] : memref<1x128xf32, #tpu.memory_space<vmem>>, vector<1x128xf32>
    %13 = vector.broadcast %12 : vector<1x128xf32> to vector<4x128xf32>
    %14 = arith.addf %11, %13 : vector<4x128xf32>
    %c0_13 = arith.constant 0 : index
    %c0_14 = arith.constant 0 : index
    %15 = vector.load %arg11[%c0_13, %c0_14] : memref<128x128xf32, #tpu.memory_space<vmem>>, vector<128x128xf32>
    %cst_15 = arith.constant dense<0.000000e+00> : vector<4x128xf32>
    %16 = tpu.matmul %14, %15, %cst_15 {dimension_numbers = #tpu.dot_dimension_numbers<[1], [0], [0], [1], [0, 0, 1, 1], [], []>} : vector<4x128xf32>, vector<128x128xf32>, vector<4x128xf32> -> vector<4x128xf32>
    %17 = arith.subf %14, %16 : vector<4x128xf32>
    %18 = arith.mulf %17, %17 : vector<4x128xf32>
    %c0_16 = arith.constant 0 : index
    %c0_17 = arith.constant 0 : index
    %19 = vector.load %arg11[%c0_16, %c0_17] : memref<128x128xf32, #tpu.memory_space<vmem>>, vector<128x128xf32>
    %cst_18 = arith.constant dense<0.000000e+00> : vector<4x128xf32>
    %20 = tpu.matmul %18, %19, %cst_18 {dimension_numbers = #tpu.dot_dimension_numbers<[1], [0], [0], [1], [0, 0, 1, 1], [], []>} : vector<4x128xf32>, vector<128x128xf32>, vector<4x128xf32> -> vector<4x128xf32>
    %cst_19 = arith.constant 9.99999974E-6 : f32
    %21 = vector.broadcast %cst_19 : f32 to vector<4x128xf32>
    %22 = arith.addf %20, %21 : vector<4x128xf32>
    %23 = math.rsqrt %22 : vector<4x128xf32>
    %24 = arith.mulf %17, %23 : vector<4x128xf32>
    %c0_20 = arith.constant 0 : index
    %c0_21 = arith.constant 0 : index
    %25 = vector.load %arg7[%c0_20, %c0_21] : memref<1x128xf32, #tpu.memory_space<vmem>>, vector<1x128xf32>
    %26 = vector.broadcast %25 : vector<1x128xf32> to vector<4x128xf32>
    %27 = arith.mulf %24, %26 : vector<4x128xf32>
    %c0_22 = arith.constant 0 : index
    %c0_23 = arith.constant 0 : index
    %28 = vector.load %arg8[%c0_22, %c0_23] : memref<1x128xf32, #tpu.memory_space<vmem>>, vector<1x128xf32>
    %29 = vector.broadcast %28 : vector<1x128xf32> to vector<4x128xf32>
    %30 = arith.addf %27, %29 : vector<4x128xf32>
    %cst_24 = arith.constant 5.000000e-01 : f32
    %31 = vector.broadcast %cst_24 : f32 to vector<4x128xf32>
    %32 = arith.mulf %31, %30 : vector<4x128xf32>
    %cst_25 = arith.constant 0.707106769 : f32
    %33 = vector.broadcast %cst_25 : f32 to vector<4x128xf32>
    %34 = arith.mulf %30, %33 : vector<4x128xf32>
    %cst_26 = arith.constant 0.000000e+00 : f32
    %35 = vector.broadcast %cst_26 : f32 to vector<4x128xf32>
    %36 = arith.cmpf oge, %34, %35 : vector<4x128xf32>
    %cst_27 = arith.constant 1.000000e+00 : f32
    %cst_28 = arith.constant -1.000000e+00 : f32
    %37 = vector.broadcast %cst_27 : f32 to vector<4x128xf32>
    %38 = vector.broadcast %cst_28 : f32 to vector<4x128xf32>
    %39 = arith.select %36, %37, %38 : vector<4x128xi1>, vector<4x128xf32>
    %40 = math.absf %34 : vector<4x128xf32>
    %cst_29 = arith.constant 0.327591091 : f32
    %41 = vector.broadcast %cst_29 : f32 to vector<4x128xf32>
    %42 = arith.mulf %41, %40 : vector<4x128xf32>
    %cst_30 = arith.constant 1.000000e+00 : f32
    %43 = vector.broadcast %cst_30 : f32 to vector<4x128xf32>
    %44 = arith.addf %43, %42 : vector<4x128xf32>
    %cst_31 = arith.constant 1.000000e+00 : f32
    %45 = vector.broadcast %cst_31 : f32 to vector<4x128xf32>
    %46 = arith.divf %45, %44 : vector<4x128xf32>
    %cst_32 = arith.constant 1.06140542 : f32
    %47 = vector.broadcast %cst_32 : f32 to vector<4x128xf32>
    %48 = arith.mulf %47, %46 : vector<4x128xf32>
    %cst_33 = arith.constant -1.45315206 : f32
    %49 = vector.broadcast %cst_33 : f32 to vector<4x128xf32>
    %50 = arith.addf %48, %49 : vector<4x128xf32>
    %51 = arith.mulf %50, %46 : vector<4x128xf32>
    %cst_34 = arith.constant 1.42141378 : f32
    %52 = vector.broadcast %cst_34 : f32 to vector<4x128xf32>
    %53 = arith.addf %51, %52 : vector<4x128xf32>
    %54 = arith.mulf %53, %46 : vector<4x128xf32>
    %cst_35 = arith.constant -0.284496725 : f32
    %55 = vector.broadcast %cst_35 : f32 to vector<4x128xf32>
    %56 = arith.addf %54, %55 : vector<4x128xf32>
    %57 = arith.mulf %56, %46 : vector<4x128xf32>
    %cst_36 = arith.constant 0.254829586 : f32
    %58 = vector.broadcast %cst_36 : f32 to vector<4x128xf32>
    %59 = arith.addf %57, %58 : vector<4x128xf32>
    %60 = arith.mulf %59, %46 : vector<4x128xf32>
    %cst_37 = arith.constant 0.000000e+00 : f32
    %61 = vector.broadcast %cst_37 : f32 to vector<4x128xf32>
    %62 = arith.subf %61, %40 : vector<4x128xf32>
    %63 = arith.mulf %62, %40 : vector<4x128xf32>
    %64 = math.exp %63 : vector<4x128xf32>
    %65 = arith.mulf %60, %64 : vector<4x128xf32>
    %cst_38 = arith.constant 1.000000e+00 : f32
    %66 = vector.broadcast %cst_38 : f32 to vector<4x128xf32>
    %67 = arith.subf %66, %65 : vector<4x128xf32>
    %68 = arith.mulf %39, %67 : vector<4x128xf32>
    %cst_39 = arith.constant 1.000000e+00 : f32
    %69 = vector.broadcast %cst_39 : f32 to vector<4x128xf32>
    %70 = arith.addf %69, %68 : vector<4x128xf32>
    %71 = arith.mulf %32, %70 : vector<4x128xf32>
    %72 = arith.truncf %71 : vector<4x128xf32> to vector<4x128xbf16>
    %c0_40 = arith.constant 0 : index
    %c0_41 = arith.constant 0 : index
    %73 = vector.load %arg9[%c0_40, %c0_41] : memref<128x256xbf16, #tpu.memory_space<vmem>>, vector<128x256xbf16>
    %cst_42 = arith.constant dense<0.000000e+00> : vector<4x256xf32>
    %74 = tpu.matmul %72, %73, %cst_42 {dimension_numbers = #tpu.dot_dimension_numbers<[1], [0], [0], [1], [0, 0, 1, 1], [], []>} : vector<4x128xbf16>, vector<128x256xbf16>, vector<4x256xf32> -> vector<4x256xf32>
    %c0_43 = arith.constant 0 : index
    %c0_44 = arith.constant 0 : index
    %75 = vector.load %arg10[%c0_43, %c0_44] : memref<1x256xf32, #tpu.memory_space<vmem>>, vector<1x256xf32>
    %76 = vector.broadcast %75 : vector<1x256xf32> to vector<4x256xf32>
    %77 = arith.addf %74, %76 : vector<4x256xf32>
    %78 = vector.extract_strided_slice %77 {offsets = [0, 0], sizes = [4, 128], strides = [1, 1]} : vector<4x256xf32> to vector<4x128xf32>
    %79 = vector.extract_strided_slice %77 {offsets = [0, 128], sizes = [4, 128], strides = [1, 1]} : vector<4x256xf32> to vector<4x128xf32>
    %c0_45 = arith.constant 0 : index
    %c0_46 = arith.constant 0 : index
    %80 = vector.load %arg12[%c0_45, %c0_46] : memref<64x128xf32, #tpu.memory_space<vmem>>, vector<64x128xf32>
    %81 = tpu.concatenate %78, %78, %78, %78, %78, %78, %78, %78, %78, %78, %78, %78, %78, %78, %78, %78 in 0 : vector<4x128xf32>, vector<4x128xf32>, vector<4x128xf32>, vector<4x128xf32>, vector<4x128xf32>, vector<4x128xf32>, vector<4x128xf32>, vector<4x128xf32>, vector<4x128xf32>, vector<4x128xf32>, vector<4x128xf32>, vector<4x128xf32>, vector<4x128xf32>, vector<4x128xf32>, vector<4x128xf32>, vector<4x128xf32> -> vector<64x128xf32>
    %82 = arith.mulf %81, %80 : vector<64x128xf32>
    %83 = arith.truncf %82 : vector<64x128xf32> to vector<64x128xbf16>
    %84 = tpu.concatenate %79, %79, %79, %79, %79, %79, %79, %79, %79, %79, %79, %79, %79, %79, %79, %79 in 0 : vector<4x128xf32>, vector<4x128xf32>, vector<4x128xf32>, vector<4x128xf32>, vector<4x128xf32>, vector<4x128xf32>, vector<4x128xf32>, vector<4x128xf32>, vector<4x128xf32>, vector<4x128xf32>, vector<4x128xf32>, vector<4x128xf32>, vector<4x128xf32>, vector<4x128xf32>, vector<4x128xf32>, vector<4x128xf32> -> vector<64x128xf32>
    %85 = arith.mulf %84, %80 : vector<64x128xf32>
    %86 = arith.truncf %85 : vector<64x128xf32> to vector<64x128xbf16>
    %87 = arith.truncf %6 : vector<196x128xf32> to vector<196x128xbf16>
    %cst_47 = arith.constant dense<0.000000e+00> : vector<196x64xf32>
    %88 = tpu.matmul %87, %83, %cst_47 {dimension_numbers = #tpu.dot_dimension_numbers<[1], [1], [0], [0], [0, 0, 1, 0], [], []>} : vector<196x128xbf16>, vector<64x128xbf16>, vector<196x64xf32> -> vector<196x64xf32>
    %cst_48 = arith.constant dense<0xFF800000> : vector<196xf32>
    %89 = vector.multi_reduction <maximumf>, %88, %cst_48 [1] : vector<196x64xf32> to vector<196xf32>
    %90 = vector.shape_cast %89 : vector<196xf32> to vector<196x1xf32>
    %91 = vector.broadcast %90 : vector<196x1xf32> to vector<196x64xf32>
    %92 = arith.subf %88, %91 : vector<196x64xf32>
    %93 = math.exp %92 : vector<196x64xf32>
    %94 = arith.truncf %93 : vector<196x64xf32> to vector<196x64xbf16>
    %c0_49 = arith.constant 0 : index
    %c0_50 = arith.constant 0 : index
    %95 = vector.load %arg13[%c0_49, %c0_50] : memref<64x64xbf16, #tpu.memory_space<vmem>>, vector<64x64xbf16>
    %cst_51 = arith.constant dense<0.000000e+00> : vector<196x64xf32>
    %96 = tpu.matmul %94, %95, %cst_51 {dimension_numbers = #tpu.dot_dimension_numbers<[1], [0], [0], [1], [0, 0, 1, 1], [], []>} : vector<196x64xbf16>, vector<64x64xbf16>, vector<196x64xf32> -> vector<196x64xf32>
    %97 = tpu.reciprocal %96 {approx = true} : vector<196x64xf32> -> vector<196x64xf32>
    %98 = arith.mulf %93, %97 : vector<196x64xf32>
    %99 = arith.truncf %98 : vector<196x64xf32> to vector<196x64xbf16>
    %cst_52 = arith.constant dense<0.000000e+00> : vector<196x128xf32>
    %100 = tpu.matmul %99, %86, %cst_52 {dimension_numbers = #tpu.dot_dimension_numbers<[1], [0], [0], [1], [0, 0, 1, 1], [], []>} : vector<196x64xbf16>, vector<64x128xbf16>, vector<196x128xf32> -> vector<196x128xf32>
    %c0_53 = arith.constant 0 : index
    %c0_54 = arith.constant 0 : index
    %101 = vector.load %arg14[%c0_53, %c0_54] : memref<196x128xf32, #tpu.memory_space<vmem>>, vector<196x128xf32>
    tpu.vector_store %arg14[%c0_53, %c0_54], %100 {strides = array<i32>} : memref<196x128xf32, #tpu.memory_space<vmem>>, vector<196x128xf32>,
    return
  }
  func.func @transform_0(%arg0: i32) -> (i32, i32) {
    %c0_i32 = arith.constant 0 : i32
    %c0_i32_0 = arith.constant 0 : i32
    %c0_i32_1 = arith.constant 0 : i32
    return %c0_i32, %c0_i32_0 : i32, i32
  }
  func.func @transform_1(%arg0: i32) -> (i32, i32) {
    %c0_i32 = arith.constant 0 : i32
    %c0_i32_0 = arith.constant 0 : i32
    %c0_i32_1 = arith.constant 0 : i32
    return %c0_i32, %c0_i32_0 : i32, i32
  }
  func.func @transform_2(%arg0: i32) -> (i32, i32) {
    %c0_i32 = arith.constant 0 : i32
    %c0_i32_0 = arith.constant 0 : i32
    %c0_i32_1 = arith.constant 0 : i32
    return %c0_i32, %c0_i32_0 : i32, i32
  }
  func.func @transform_3(%arg0: i32) -> (i32, i32) {
    %c0_i32 = arith.constant 0 : i32
    %c0_i32_0 = arith.constant 0 : i32
    %c0_i32_1 = arith.constant 0 : i32
    return %c0_i32, %c0_i32_0 : i32, i32
  }
  func.func @transform_4(%arg0: i32) -> (i32, i32) {
    %c0_i32 = arith.constant 0 : i32
    %c0_i32_0 = arith.constant 0 : i32
    %c0_i32_1 = arith.constant 0 : i32
    return %c0_i32, %c0_i32_0 : i32, i32
  }
  func.func @transform_5(%arg0: i32) -> (i32, i32) {
    %c0_i32 = arith.constant 0 : i32
    %c0_i32_0 = arith.constant 0 : i32
    %c0_i32_1 = arith.constant 0 : i32
    return %c0_i32, %c0_i32_0 : i32, i32
  }
  func.func @transform_6(%arg0: i32) -> (i32, i32) {
    %c0_i32 = arith.constant 0 : i32
    %c0_i32_0 = arith.constant 0 : i32
    %c0_i32_1 = arith.constant 0 : i32
    return %c0_i32, %c0_i32_0 : i32, i32
  }
  func.func @transform_7(%arg0: i32) -> (i32, i32) {
    %c0_i32 = arith.constant 0 : i32
    %c0_i32_0 = arith.constant 0 : i32
    %c0_i32_1 = arith.constant 0 : i32
    return %c0_i32, %c0_i32_0 : i32, i32
  }
  func.func @transform_8(%arg0: i32) -> (i32, i32) {
    %c0_i32 = arith.constant 0 : i32
    %c0_i32_0 = arith.constant 0 : i32
    %c0_i32_1 = arith.constant 0 : i32
    return %c0_i32, %c0_i32_0 : i32, i32
  }
  func.func @transform_9(%arg0: i32) -> (i32, i32) {
    %c0_i32 = arith.constant 0 : i32
    %c0_i32_0 = arith.constant 0 : i32
    %c0_i32_1 = arith.constant 0 : i32
    return %c0_i32, %c0_i32_0 : i32, i32
  }
  func.func @transform_10(%arg0: i32) -> (i32, i32) {
    %c0_i32 = arith.constant 0 : i32
    %c0_i32_0 = arith.constant 0 : i32
    %c0_i32_1 = arith.constant 0 : i32
    return %c0_i32, %c0_i32_0 : i32, i32
  }
  func.func @transform_11(%arg0: i32) -> (i32, i32) {
    %c0_i32 = arith.constant 0 : i32
    %c0_i32_0 = arith.constant 0 : i32
    %c0_i32_1 = arith.constant 0 : i32
    return %c0_i32, %c0_i32_0 : i32, i32
  }
  func.func @transform_12(%arg0: i32) -> (i32, i32) {
    %c0_i32 = arith.constant 0 : i32
    %c0_i32_0 = arith.constant 0 : i32
    %c0_i32_1 = arith.constant 0 : i32
    return %c0_i32, %c0_i32_0 : i32, i32
  }
  func.func @transform_13(%arg0: i32) -> (i32, i32) {
    %c0_i32 = arith.constant 0 : i32
    %c0_i32_0 = arith.constant 0 : i32
    %c0_i32_1 = arith.constant 0 : i32
    return %c0_i32, %c0_i32_0 : i32, i32
  }
}

</mosaic_0001>

<llo_original>
// kernel: tpu_custom_call.1
$region0: #{tpu_custom_call.1}
  #allocation0 [shape = 'u32[]', space=smem, size = 0x4, offset = 0x4, fixed_abs, tag = 'smem constant byte address 0x4 - core index']
  #allocation1 [shape = 'u32[144,128]{1,0:T(1,128)}', space=vmem, size = 0x12000, scoped, tag = 'internal scratch']
  %s0 = inlined_call_operand.hbm [shape: f32[196,128], index: 0, kind: input, shape index: {}]
  %s1 = inlined_call_operand.hbm [shape: bf16[4,196], index: 1, kind: input, shape index: {}]
  %s2 = inlined_call_operand.hbm [shape: bf16[128,128], index: 2, kind: input, shape index: {}]
  %s3 = inlined_call_operand.vmem [shape: f32[1,128], index: 3, kind: input, shape index: {}]
  %s4 = inlined_call_operand.hbm [shape: bf16[128,128], index: 4, kind: input, shape index: {}]
  %s5 = inlined_call_operand.vmem [shape: f32[1,128], index: 5, kind: input, shape index: {}]
  %s6 = inlined_call_operand.vmem [shape: f32[1,128], index: 6, kind: input, shape index: {}]
  %s7 = inlined_call_operand.vmem [shape: f32[1,128], index: 7, kind: input, shape index: {}]
  %s8 = inlined_call_operand.hbm [shape: bf16[128,256], index: 8, kind: input, shape index: {}]
  %s9 = inlined_call_operand.vmem [shape: f32[1,256], index: 9, kind: input, shape index: {}]
  %s10 = inlined_call_operand.hbm [shape: f32[128,128], index: 10, kind: input, shape index: {}]
  %s11 = inlined_call_operand.hbm [shape: f32[64,128], index: 11, kind: input, shape index: {}]
  %s12 = inlined_call_operand.hbm [shape: bf16[64,64], index: 12, kind: input, shape index: {}]
  %s13 = inlined_call_operand.hbm [shape: f32[196,128], index: 13, kind: output, shape index: {}]
  %s14 = sld [smem:[#allocation0]]
  $region94: #{tpu_custom_call.1} parent=0
    _
  %s16 = ssub.s32 1, %s14
  %s17 = scalar_select 0, %s16, %s14
  $region1: #{tpu_custom_call.1} parent=0
    #allocation2 [shape = 'u8[102400]{0}', space=vmem, size = 0x19000, scoped, tag = 'input window, operand 0, single buffered']
    #allocation3 [shape = 's32[1]{0}', space=sflag, size = 0x4, scoped, tag = 'scoped memory for tpu_custom_call.1']
    #allocation4 [shape = 's32[1]{0}', space=sflag, size = 0x4, scoped, tag = 'scoped memory for tpu_custom_call.1']
    #allocation5 [shape = 'u8[2048]{0}', space=vmem, size = 0x800, scoped, tag = 'input window, operand 1, single buffered']
    #allocation6 [shape = 's32[1]{0}', space=sflag, size = 0x4, scoped, tag = 'scoped memory for tpu_custom_call.1']
    #allocation7 [shape = 'u8[32768]{0}', space=vmem, size = 0x8000, scoped, tag = 'input window, operand 2, single buffered']
    #allocation8 [shape = 'u8[32768]{0}', space=vmem, size = 0x8000, scoped, tag = 'input window, operand 4, single buffered']
    #allocation9 [shape = 's32[1]{0}', space=sflag, size = 0x4, scoped, tag = 'scoped memory for tpu_custom_call.1']
    #allocation10 [shape = 'u8[65536]{0}', space=vmem, size = 0x10000, scoped, tag = 'input window, operand 8, single buffered']
    #allocation11 [shape = 'u8[65536]{0}', space=vmem, size = 0x10000, scoped, tag = 'input window, operand 10, single buffered']
    #allocation12 [shape = 's32[1]{0}', space=sflag, size = 0x4, scoped, tag = 'scoped memory for tpu_custom_call.1']
    #allocation13 [shape = 'u8[32768]{0}', space=vmem, size = 0x8000, scoped, tag = 'input window, operand 11, single buffered']
    #allocation14 [shape = 'u8[16384]{0}', space=vmem, size = 0x4000, scoped, tag = 'input window, operand 12, single buffered']
    #allocation15 [shape = 's32[1]{0}', space=sflag, size = 0x4, scoped, tag = 'scoped memory for tpu_custom_call.1']
    #allocation16 [shape = 'u8[102400]{0}', space=vmem, size = 0x19000, scoped, tag = 'output window, operand 0, single buffered']
    %18 = vsyncpa [#allocation3], 0
    %19 = vsyncpa [#allocation6], 0
    %20 = vsyncpa [#allocation9], 0
    %21 = vsyncpa [#allocation12], 0
    %22 = vsyncpa [#allocation15], 0
    %23 = vsyncpa [#allocation4], 0
    // Predicated region
    $region2: #{tpu_custom_call.1} parent=1 // pred_check
      _
    $region3: #{tpu_custom_call.1} parent=1 // pred_check_branch
      %25 = sbr.rel (0) target = $region5
    $region4: #{tpu_custom_call.1} parent=1 // pred_region
      %s27 = ssub.s32 3200, 3200
      %28 = vsyncadd [#allocation3], %s27
      %s29 = sshll.u32 [#allocation2], 4
      %s30 = int_to_ptr.vmem [resolvable:$true] %s29
      %35 = dma.hbm_to_vmem [thread:$0]  %s0, 3200, %s30, [#allocation3], 128, 128, 8
    $region5: #{tpu_custom_call.1} parent=1 // pred_fallthru
      _
    // Predicated region
    $region6: #{tpu_custom_call.1} parent=1 // pred_check
      _
    $region7: #{tpu_custom_call.1} parent=1 // pred_check_branch
      %37 = sbr.rel (0) target = $region9
    $region8: #{tpu_custom_call.1} parent=1 // pred_region
      %s39 = ssub.s32 64, 64
      %40 = vsyncadd [#allocation6], %s39
      %s42 = sshll.u32 [#allocation5], 4
      %s43 = int_to_ptr.vmem [resolvable:$true] %s42
      %45 = dma.hbm_to_vmem [thread:$0]  %s1, 64, %s43, [#allocation6]
    $region9: #{tpu_custom_call.1} parent=1 // pred_fallthru
      _
    // Predicated region
    $region10: #{tpu_custom_call.1} parent=1 // pred_check
      _
    $region11: #{tpu_custom_call.1} parent=1 // pred_check_branch
      %47 = sbr.rel (0) target = $region13
    $region12: #{tpu_custom_call.1} parent=1 // pred_region
      %s49 = ssub.s32 1024, 1024
      %50 = vsyncadd [#allocation6], %s49
      %s51 = sshll.u32 [#allocation7], 4
      %s52 = int_to_ptr.vmem [resolvable:$true] %s51
      %57 = dma.hbm_to_vmem [thread:$0]  %s2, 1024, %s52, [#allocation6], 64, 64, 4
    $region13: #{tpu_custom_call.1} parent=1 // pred_fallthru
      _
    // Predicated region
    $region14: #{tpu_custom_call.1} parent=1 // pred_check
      _
    $region15: #{tpu_custom_call.1} parent=1 // pred_check_branch
      %59 = sbr.rel (0) target = $region17
    $region16: #{tpu_custom_call.1} parent=1 // pred_region
      _
    $region17: #{tpu_custom_call.1} parent=1 // pred_fallthru
      _
    // Predicated region
    $region18: #{tpu_custom_call.1} parent=1 // pred_check
      _
    $region19: #{tpu_custom_call.1} parent=1 // pred_check_branch
      %61 = sbr.rel (0) target = $region21
    $region20: #{tpu_custom_call.1} parent=1 // pred_region
      %s63 = ssub.s32 1024, 1024
      %64 = vsyncadd [#allocation9], %s63
      %s65 = sshll.u32 [#allocation8], 4
      %s66 = int_to_ptr.vmem [resolvable:$true] %s65
      %71 = dma.hbm_to_vmem [thread:$0]  %s4, 1024, %s66, [#allocation9], 64, 64, 4
    $region21: #{tpu_custom_call.1} parent=1 // pred_fallthru
      _
    // Predicated region
    $region22: #{tpu_custom_call.1} parent=1 // pred_check
      _
    $region23: #{tpu_custom_call.1} parent=1 // pred_check_branch
      %73 = sbr.rel (0) target = $region25
    $region24: #{tpu_custom_call.1} parent=1 // pred_region
      _
    $region25: #{tpu_custom_call.1} parent=1 // pred_fallthru
      _
    // Predicated region
    $region26: #{tpu_custom_call.1} parent=1 // pred_check
      _
    $region27: #{tpu_custom_call.1} parent=1 // pred_check_branch
      %75 = sbr.rel (0) target = $region29
    $region28: #{tpu_custom_call.1} parent=1 // pred_region
      _
    $region29: #{tpu_custom_call.1} parent=1 // pred_fallthru
      _
    // Predicated region
    $region30: #{tpu_custom_call.1} parent=1 // pred_check
      _
    $region31: #{tpu_custom_call.1} parent=1 // pred_check_branch
      %77 = sbr.rel (0) target = $region33
    $region32: #{tpu_custom_call.1} parent=1 // pred_region
      _
    $region33: #{tpu_custom_call.1} parent=1 // pred_fallthru
      _
    // Predicated region
    $region34: #{tpu_custom_call.1} parent=1 // pred_check
      _
    $region35: #{tpu_custom_call.1} parent=1 // pred_check_branch
      %79 = sbr.rel (0) target = $region37
    $region36: #{tpu_custom_call.1} parent=1 // pred_region
      %s81 = ssub.s32 2048, 2048
      %82 = vsyncadd [#allocation9], %s81
      %s83 = sshll.u32 [#allocation10], 4
      %s84 = int_to_ptr.vmem [resolvable:$true] %s83
      %89 = dma.hbm_to_vmem [thread:$0]  %s8, 2048, %s84, [#allocation9], 128, 128, 8
    $region37: #{tpu_custom_call.1} parent=1 // pred_fallthru
      _
    // Predicated region
    $region38: #{tpu_custom_call.1} parent=1 // pred_check
      _
    $region39: #{tpu_custom_call.1} parent=1 // pred_check_branch
      %91 = sbr.rel (0) target = $region41
    $region40: #{tpu_custom_call.1} parent=1 // pred_region
      _
    $region41: #{tpu_custom_call.1} parent=1 // pred_fallthru
      _
    // Predicated region
    $region42: #{tpu_custom_call.1} parent=1 // pred_check
      _
    $region43: #{tpu_custom_call.1} parent=1 // pred_check_branch
      %93 = sbr.rel (0) target = $region45
    $region44: #{tpu_custom_call.1} parent=1 // pred_region
      %s95 = ssub.s32 2048, 2048
      %96 = vsyncadd [#allocation12], %s95
      %s97 = sshll.u32 [#allocation11], 4
      %s98 = int_to_ptr.vmem [resolvable:$true] %s97
      %103 = dma.hbm_to_vmem [thread:$0]  %s10, 2048, %s98, [#allocation12], 128, 128, 8
    $region45: #{tpu_custom_call.1} parent=1 // pred_fallthru
      _
    // Predicated region
    $region46: #{tpu_custom_call.1} parent=1 // pred_check
      _
    $region47: #{tpu_custom_call.1} parent=1 // pred_check_branch
      %105 = sbr.rel (0) target = $region49
    $region48: #{tpu_custom_call.1} parent=1 // pred_region
      %s107 = ssub.s32 1024, 1024
      %108 = vsyncadd [#allocation12], %s107
      %s109 = sshll.u32 [#allocation13], 4
      %s110 = int_to_ptr.vmem [resolvable:$true] %s109
      %115 = dma.hbm_to_vmem [thread:$0]  %s11, 1024, %s110, [#allocation12], 128, 128, 8
    $region49: #{tpu_custom_call.1} parent=1 // pred_fallthru
      _
    // Predicated region
    $region50: #{tpu_custom_call.1} parent=1 // pred_check
      _
    $region51: #{tpu_custom_call.1} parent=1 // pred_check_branch
      %117 = sbr.rel (0) target = $region53
    $region52: #{tpu_custom_call.1} parent=1 // pred_region
      %s119 = ssub.s32 512, 512
      %120 = vsyncadd [#allocation15], %s119
      %s121 = sshll.u32 [#allocation14], 4
      %s122 = int_to_ptr.vmem [resolvable:$true] %s121
      %127 = dma.hbm_to_vmem [thread:$0]  %s12, 512, %s122, [#allocation15], 64, 64, 4
    $region53: #{tpu_custom_call.1} parent=1 // pred_fallthru
      _
    // Predicated region
    $region54: #{tpu_custom_call.1} parent=1 // pred_check
      _
    $region55: #{tpu_custom_call.1} parent=1 // pred_check_branch
      %129 = sbr.rel (0) target = $region57
    $region56: #{tpu_custom_call.1} parent=1 // pred_region
      %130 = dma.done [#allocation3], 3200
    $region57: #{tpu_custom_call.1} parent=1 // pred_fallthru
      _
    // Predicated region
    $region58: #{tpu_custom_call.1} parent=1 // pred_check
      _
    $region59: #{tpu_custom_call.1} parent=1 // pred_check_branch
      %132 = sbr.rel (0) target = $region61
    $region60: #{tpu_custom_call.1} parent=1 // pred_region
      %133 = dma.done [#allocation6], 64
    $region61: #{tpu_custom_call.1} parent=1 // pred_fallthru
      _
    // Predicated region
    $region62: #{tpu_custom_call.1} parent=1 // pred_check
      _
    $region63: #{tpu_custom_call.1} parent=1 // pred_check_branch
      %135 = sbr.rel (0) target = $region65
    $region64: #{tpu_custom_call.1} parent=1 // pred_region
      %136 = dma.done [#allocation6], 1024
    $region65: #{tpu_custom_call.1} parent=1 // pred_fallthru
      _
    // Predicated region
    $region66: #{tpu_custom_call.1} parent=1 // pred_check
      _
    $region67: #{tpu_custom_call.1} parent=1 // pred_check_branch
      %138 = sbr.rel (0) target = $region69
    $region68: #{tpu_custom_call.1} parent=1 // pred_region
      %139 = dma.done [#allocation9], 1024
    $region69: #{tpu_custom_call.1} parent=1 // pred_fallthru
      _
    // Predicated region
    $region70: #{tpu_custom_call.1} parent=1 // pred_check
      _
    $region71: #{tpu_custom_call.1} parent=1 // pred_check_branch
      %141 = sbr.rel (0) target = $region73
    $region72: #{tpu_custom_call.1} parent=1 // pred_region
      %142 = dma.done [#allocation9], 2048
    $region73: #{tpu_custom_call.1} parent=1 // pred_fallthru
      _
    // Predicated region
    $region74: #{tpu_custom_call.1} parent=1 // pred_check
      _
    $region75: #{tpu_custom_call.1} parent=1 // pred_check_branch
      %144 = sbr.rel (0) target = $region77
    $region76: #{tpu_custom_call.1} parent=1 // pred_region
      %145 = dma.done [#allocation12], 2048
    $region77: #{tpu_custom_call.1} parent=1 // pred_fallthru
      _
    // Predicated region
    $region78: #{tpu_custom_call.1} parent=1 // pred_check
      _
    $region79: #{tpu_custom_call.1} parent=1 // pred_check_branch
      %147 = sbr.rel (0) target = $region81
    $region80: #{tpu_custom_call.1} parent=1 // pred_region
      %148 = dma.done [#allocation12], 1024
    $region81: #{tpu_custom_call.1} parent=1 // pred_fallthru
      _
    // Predicated region
    $region82: #{tpu_custom_call.1} parent=1 // pred_check
      _
    $region83: #{tpu_custom_call.1} parent=1 // pred_check_branch
      %150 = sbr.rel (0) target = $region85
    $region84: #{tpu_custom_call.1} parent=1 // pred_region
      %151 = dma.done [#allocation15], 512
    $region85: #{tpu_custom_call.1} parent=1 // pred_fallthru
      _
    %v153 = vld [vmem:[#allocation2] sm:$0xff]
    %v154 = vld [vmem:[#allocation2 + $0x8] sm:$0xff]
    %v155 = vld [vmem:[#allocation2 + $0x10] sm:$0xff]
    %v156 = vld [vmem:[#allocation2 + $0x18] sm:$0xff]
    %v157 = vld [vmem:[#allocation2 + $0x20] sm:$0xff]
    %v158 = vld [vmem:[#allocation2 + $0x28] sm:$0xff]
    %v159 = vld [vmem:[#allocation2 + $0x30] sm:$0xff]
    %v160 = vld [vmem:[#allocation2 + $0x38] sm:$0xff]
    %v161 = vld [vmem:[#allocation2 + $0x40] sm:$0xff]
    %v162 = vld [vmem:[#allocation2 + $0x48] sm:$0xff]
    %v163 = vld [vmem:[#allocation2 + $0x50] sm:$0xff]
    %v164 = vld [vmem:[#allocation2 + $0x58] sm:$0xff]
    %v165 = vld [vmem:[#allocation2 + $0x60] sm:$0xff]
    %v166 = vld [vmem:[#allocation2 + $0x68] sm:$0xff]
    %v167 = vld [vmem:[#allocation2 + $0x70] sm:$0xff]
    %v168 = vld [vmem:[#allocation2 + $0x78] sm:$0xff]
    %v169 = vld [vmem:[#allocation2 + $0x80] sm:$0xff]
    %v170 = vld [vmem:[#allocation2 + $0x88] sm:$0xff]
    %v171 = vld [vmem:[#allocation2 + $0x90] sm:$0xff]
    %v172 = vld [vmem:[#allocation2 + $0x98] sm:$0xff]
    %v173 = vld [vmem:[#allocation2 + $0xa0] sm:$0xff]
    %v174 = vld [vmem:[#allocation2 + $0xa8] sm:$0xff]
    %v175 = vld [vmem:[#allocation2 + $0xb0] sm:$0xff]
    %v176 = vld [vmem:[#allocation2 + $0xb8] sm:$0xff]
    %v177 = vld [vmem:[#allocation2 + $0xc0] sm:$0xf]
    %v178 = vpack.c.bf16 %v154, %v153
    %v179 = vpack.c.bf16 %v156, %v155
    %v180 = vpack.c.bf16 %v158, %v157
    %v181 = vpack.c.bf16 %v160, %v159
    %v182 = vpack.c.bf16 %v162, %v161
    %v183 = vpack.c.bf16 %v164, %v163
    %v184 = vpack.c.bf16 %v166, %v165
    %v185 = vpack.c.bf16 %v168, %v167
    %v186 = vpack.c.bf16 %v170, %v169
    %v187 = vpack.c.bf16 %v172, %v171
    %v188 = vpack.c.bf16 %v174, %v173
    %v189 = vpack.c.bf16 %v176, %v175
    %v190 = vpack.c.bf16 %v177, %v177
    %v191 = vld [vmem:[#allocation7] sm:$0xf]
    %v192 = vld [vmem:[#allocation7 + $0x4] sm:$0xf]
    %v193 = vld [vmem:[#allocation7 + $0x8] sm:$0xf]
    %v194 = vld [vmem:[#allocation7 + $0xc] sm:$0xf]
    %v195 = vld [vmem:[#allocation7 + $0x10] sm:$0xf]
    %v196 = vld [vmem:[#allocation7 + $0x14] sm:$0xf]
    %v197 = vld [vmem:[#allocation7 + $0x18] sm:$0xf]
    %v198 = vld [vmem:[#allocation7 + $0x1c] sm:$0xf]
    %v199 = vld [vmem:[#allocation7 + $0x20] sm:$0xf]
    %v200 = vld [vmem:[#allocation7 + $0x24] sm:$0xf]
    %v201 = vld [vmem:[#allocation7 + $0x28] sm:$0xf]
    %v202 = vld [vmem:[#allocation7 + $0x2c] sm:$0xf]
    %v203 = vld [vmem:[#allocation7 + $0x30] sm:$0xf]
    %v204 = vld [vmem:[#allocation7 + $0x34] sm:$0xf]
    %v205 = vld [vmem:[#allocation7 + $0x38] sm:$0xf]
    %v206 = vld [vmem:[#allocation7 + $0x3c] sm:$0xf]
    %v207 = vld [vmem:[%s3] sm:$0x1]
    %v209 = vlaneseq
    %v210 = vshrl.u32 %v209, 7
    %v211 = vsub.s32 0, %v210
    %v212 = vrot.slane %v207, %v211
    %v230 = vunpack.c.l.b16 %v191
    %v231 = vunpack.c.l.b16 %v192
    %v232 = vunpack.c.l.b16 %v193
    %v233 = vunpack.c.l.b16 %v194
    %v234 = vunpack.c.l.b16 %v195
    %v235 = vunpack.c.l.b16 %v196
    %v236 = vunpack.c.l.b16 %v197
    %v237 = vunpack.c.l.b16 %v198
    %v238 = vunpack.c.l.b16 %v199
    %v239 = vunpack.c.l.b16 %v200
    %v240 = vunpack.c.l.b16 %v201
    %v241 = vunpack.c.l.b16 %v202
    %v242 = vunpack.c.l.b16 %v203
    %v243 = vunpack.c.l.b16 %v204
    %v244 = vunpack.c.l.b16 %v205
    %v245 = vunpack.c.l.b16 %v206
    %v246 = vpack.c.b16 %v231, %v230
    %v247 = vpack.c.b16 %v233, %v232
    %v248 = vpack.c.b16 %v235, %v234
    %v249 = vpack.c.b16 %v237, %v236
    %v250 = vpack.c.b16 %v239, %v238
    %v251 = vpack.c.b16 %v241, %v240
    %v252 = vpack.c.b16 %v243, %v242
    %v253 = vpack.c.b16 %v245, %v244
    %262 = vmatprep.subr.bf16.mxu0 0
    %263 = vmatpush1.bf16.msra.mxu0 %v253
    %264 = vmatprep.subr.bf16.mxu0 0
    %265 = vmatpush1.bf16.msra.mxu0 %v252
    %266 = vmatprep.subr.bf16.mxu0 0
    %267 = vmatpush1.bf16.msra.mxu0 %v251
    %268 = vmatprep.subr.bf16.mxu0 0
    %269 = vmatpush1.bf16.msra.mxu0 %v250
    %270 = vmatprep.subr.bf16.mxu0 0
    %271 = vmatpush1.bf16.msra.mxu0 %v249
    %272 = vmatprep.subr.bf16.mxu0 0
    %273 = vmatpush1.bf16.msra.mxu0 %v248
    %274 = vmatprep.subr.bf16.mxu0 0
    %275 = vmatpush1.bf16.msra.mxu0 %v247
    %276 = vmatprep.subr.bf16.mxu0 0
    %277 = vmatpush1.bf16.msra.mxu0 %v246
    %278 = vmatprep.subr.bf16.mxu0 0
    %279 = vmatpush2.bf16.msra.mxu0 0
    %280 = vmatprep.subr.bf16.mxu0 0
    %281 = vmatpush2.bf16.msra.mxu0 0
    %282 = vmatprep.subr.bf16.mxu0 0
    %283 = vmatpush2.bf16.msra.mxu0 0
    %284 = vmatprep.subr.bf16.mxu0 0
    %285 = vmatpush2.bf16.msra.mxu0 0
    %286 = vmatprep.subr.bf16.mxu0 0
    %287 = vmatpush2.bf16.msra.mxu0 0
    %288 = vmatprep.subr.bf16.mxu0 0
    %289 = vmatpush2.bf16.msra.mxu0 0
    %290 = vmatprep.subr.bf16.mxu0 0
    %291 = vmatpush2.bf16.msra.mxu0 0
    %292 = vmatprep.subr.bf16.mxu0 0
    %293 = vmatpush2.bf16.msra.mxu0 0
    %294 = vmatprep.mubr.bf16.mxu0 0
    %295 = vmatmul.mubr.bf16.gmra.mxu0 %v178
    %v296 = vpop.f32.mrf.mxu0
    %v297 = vadd.f32 %v212, %v296
    %v298 = vpop.f32.mrf.mxu0
    %v299 = vpop.f32.mrf.mxu0
    %v300 = vadd.f32 %v212, %v299
    %v301 = vpop.f32.mrf.mxu0
    %302 = vmatprep.mubr.bf16.mxu0 0
    %303 = vmatmul.mubr.bf16.gmra.mxu0 %v179
    %v304 = vpop.f32.mrf.mxu0
    %v305 = vadd.f32 %v212, %v304
    %v306 = vpop.f32.mrf.mxu0
    %v307 = vpop.f32.mrf.mxu0
    %v308 = vadd.f32 %v212, %v307
    %v309 = vpop.f32.mrf.mxu0
    %310 = vmatprep.mubr.bf16.mxu0 0
    %311 = vmatmul.mubr.bf16.gmra.mxu0 %v180
    %v312 = vpop.f32.mrf.mxu0
    %v313 = vadd.f32 %v212, %v312
    %v314 = vpop.f32.mrf.mxu0
    %v315 = vpop.f32.mrf.mxu0
    %v316 = vadd.f32 %v212, %v315
    %v317 = vpop.f32.mrf.mxu0
    %318 = vmatprep.mubr.bf16.mxu0 0
    %319 = vmatmul.mubr.bf16.gmra.mxu0 %v181
    %v320 = vpop.f32.mrf.mxu0
    %v321 = vadd.f32 %v212, %v320
    %v322 = vpop.f32.mrf.mxu0
    %v323 = vpop.f32.mrf.mxu0
    %v324 = vadd.f32 %v212, %v323
    %v325 = vpop.f32.mrf.mxu0
    %326 = vmatprep.mubr.bf16.mxu0 0
    %327 = vmatmul.mubr.bf16.gmra.mxu0 %v182
    %v328 = vpop.f32.mrf.mxu0
    %v329 = vadd.f32 %v212, %v328
    %v330 = vpop.f32.mrf.mxu0
    %v331 = vpop.f32.mrf.mxu0
    %v332 = vadd.f32 %v212, %v331
    %v333 = vpop.f32.mrf.mxu0
    %334 = vmatprep.mubr.bf16.mxu0 0
    %335 = vmatmul.mubr.bf16.gmra.mxu0 %v183
    %v336 = vpop.f32.mrf.mxu0
    %v337 = vadd.f32 %v212, %v336
    %v338 = vpop.f32.mrf.mxu0
    %v339 = vpop.f32.mrf.mxu0
    %v340 = vadd.f32 %v212, %v339
    %v341 = vpop.f32.mrf.mxu0
    %342 = vmatprep.mubr.bf16.mxu0 0
    %343 = vmatmul.mubr.bf16.gmra.mxu0 %v184
    %v344 = vpop.f32.mrf.mxu0
    %v345 = vadd.f32 %v212, %v344
    %v346 = vpop.f32.mrf.mxu0
    %v347 = vpop.f32.mrf.mxu0
    %v348 = vadd.f32 %v212, %v347
    %v349 = vpop.f32.mrf.mxu0
    %350 = vmatprep.mubr.bf16.mxu0 0
    %351 = vmatmul.mubr.bf16.gmra.mxu0 %v185
    %v352 = vpop.f32.mrf.mxu0
    %v353 = vadd.f32 %v212, %v352
    %v354 = vpop.f32.mrf.mxu0
    %v355 = vpop.f32.mrf.mxu0
    %v356 = vadd.f32 %v212, %v355
    %v357 = vpop.f32.mrf.mxu0
    %358 = vmatprep.mubr.bf16.mxu0 0
    %359 = vmatmul.mubr.bf16.gmra.mxu0 %v186
    %v360 = vpop.f32.mrf.mxu0
    %v361 = vadd.f32 %v212, %v360
    %v362 = vpop.f32.mrf.mxu0
    %v363 = vpop.f32.mrf.mxu0
    %v364 = vadd.f32 %v212, %v363
    %v365 = vpop.f32.mrf.mxu0
    %366 = vmatprep.mubr.bf16.mxu0 0
    %367 = vmatmul.mubr.bf16.gmra.mxu0 %v187
    %v368 = vpop.f32.mrf.mxu0
    %v369 = vadd.f32 %v212, %v368
    %v370 = vpop.f32.mrf.mxu0
    %v371 = vpop.f32.mrf.mxu0
    %v372 = vadd.f32 %v212, %v371
    %v373 = vpop.f32.mrf.mxu0
    %374 = vmatprep.mubr.bf16.mxu0 0
    %375 = vmatmul.mubr.bf16.gmra.mxu0 %v188
    %v376 = vpop.f32.mrf.mxu0
    %v377 = vadd.f32 %v212, %v376
    %v378 = vpop.f32.mrf.mxu0
    %v379 = vpop.f32.mrf.mxu0
    %v380 = vadd.f32 %v212, %v379
    %v381 = vpop.f32.mrf.mxu0
    %382 = vmatprep.mubr.bf16.mxu0 0
    %383 = vmatmul.mubr.bf16.gmra.mxu0 %v189
    %v384 = vpop.f32.mrf.mxu0
    %v385 = vadd.f32 %v212, %v384
    %v386 = vpop.f32.mrf.mxu0
    %v387 = vpop.f32.mrf.mxu0
    %v388 = vadd.f32 %v212, %v387
    %v389 = vpop.f32.mrf.mxu0
    %390 = vmatprep.mubr.bf16.mxu0 0
    %391 = vmatmul.mubr.bf16.gmra.mxu0 %v190
    %v392 = vpop.f32.mrf.mxu0
    %v393 = vadd.f32 %v212, %v392
    %v394 = vpop.f32.mrf.mxu0
    %v395 = vpop.f32.mrf.mxu0
    %v396 = vpop.f32.mrf.mxu0
    %397 = vdwg.mxu0
    %v398 = vld [vmem:[#allocation5] sm:$0xf]
    %v401 = vunpack.c.l.s4 1983009808
    %v402 = vunpack.c.0.s8 %v401
    %v403 = vlaneseq
    %v404 = vshrl.u32 %v403, 7
    %v405 = vsub.s32 %v402, %v404
    %v406 = vrot.slane %v398, %v405
    %v407 = vcombine.high %v406, %v406
    %vm409 = vcmask 556032
    %v411 = vsel %vm409, %v407, 0
    %vm413 = vcmask 1041408
    %v415 = vsel %vm413, %v190, 0
    %417 = vmatprep.subr.bf16.mxu0 0
    %418 = vmatpush1.bf16.msra.mxu0 %v185
    %419 = vmatprep.subr.bf16.mxu0 0
    %420 = vmatpush1.bf16.msra.mxu0 %v184
    %421 = vmatprep.subr.bf16.mxu0 0
    %422 = vmatpush1.bf16.msra.mxu0 %v183
    %423 = vmatprep.subr.bf16.mxu0 0
    %424 = vmatpush1.bf16.msra.mxu0 %v182
    %425 = vmatprep.subr.bf16.mxu0 0
    %426 = vmatpush1.bf16.msra.mxu0 %v181
    %427 = vmatprep.subr.bf16.mxu0 0
    %428 = vmatpush1.bf16.msra.mxu0 %v180
    %429 = vmatprep.subr.bf16.mxu0 0
    %430 = vmatpush1.bf16.msra.mxu0 %v179
    %431 = vmatprep.subr.bf16.mxu0 0
    %432 = vmatpush1.bf16.msra.mxu0 %v178
    %433 = vmatprep.subr.bf16.mxu0 0
    %434 = vmatpush2.bf16.msra.mxu0 0
    %435 = vmatprep.subr.bf16.mxu0 0
    %436 = vmatpush2.bf16.msra.mxu0 0
    %437 = vmatprep.subr.bf16.mxu0 0
    %438 = vmatpush2.bf16.msra.mxu0 0
    %439 = vmatprep.subr.bf16.mxu0 0
    %440 = vmatpush2.bf16.msra.mxu0 %v415
    %441 = vmatprep.subr.bf16.mxu0 0
    %442 = vmatpush2.bf16.msra.mxu0 %v189
    %443 = vmatprep.subr.bf16.mxu0 0
    %444 = vmatpush2.bf16.msra.mxu0 %v188
    %445 = vmatprep.subr.bf16.mxu0 0
    %446 = vmatpush2.bf16.msra.mxu0 %v187
    %447 = vmatprep.subr.bf16.mxu0 0
    %448 = vmatpush2.bf16.msra.mxu0 %v186
    %449 = vmatprep.mubr.bf16.mxu0 %v411
    %450 = vmatmul.mubr.bf16.gmra.mxu0 %v406
    %v451 = vpop.f32.mrf.mxu0
    %v452 = vadd.f32 0.0, %v451
    %v453 = vpop.f32.mrf.mxu0
    %v454 = vpop.f32.mrf.mxu0
    %v455 = vpop.f32.mrf.mxu0
    %456 = vdwg.mxu0
    %v457 = vpack.c.bf16 %v452, %v452
    %v458 = vld [vmem:[#allocation8] sm:$0xf]
    %v459 = vld [vmem:[#allocation8 + $0x4] sm:$0xf]
    %v460 = vld [vmem:[#allocation8 + $0x8] sm:$0xf]
    %v461 = vld [vmem:[#allocation8 + $0xc] sm:$0xf]
    %v462 = vld [vmem:[#allocation8 + $0x10] sm:$0xf]
    %v463 = vld [vmem:[#allocation8 + $0x14] sm:$0xf]
    %v464 = vld [vmem:[#allocation8 + $0x18] sm:$0xf]
    %v465 = vld [vmem:[#allocation8 + $0x1c] sm:$0xf]
    %v466 = vld [vmem:[#allocation8 + $0x20] sm:$0xf]
    %v467 = vld [vmem:[#allocation8 + $0x24] sm:$0xf]
    %v468 = vld [vmem:[#allocation8 + $0x28] sm:$0xf]
    %v469 = vld [vmem:[#allocation8 + $0x2c] sm:$0xf]
    %v470 = vld [vmem:[#allocation8 + $0x30] sm:$0xf]
    %v471 = vld [vmem:[#allocation8 + $0x34] sm:$0xf]
    %v472 = vld [vmem:[#allocation8 + $0x38] sm:$0xf]
    %v473 = vld [vmem:[#allocation8 + $0x3c] sm:$0xf]
    %v474 = vld [vmem:[%s5] sm:$0x1]
    %v476 = vlaneseq
    %v477 = vshrl.u32 %v476, 7
    %v478 = vsub.s32 0, %v477
    %v479 = vrot.slane %v474, %v478
    %v497 = vunpack.c.l.b16 %v458
    %v498 = vunpack.c.l.b16 %v459
    %v499 = vunpack.c.l.b16 %v460
    %v500 = vunpack.c.l.b16 %v461
    %v501 = vunpack.c.l.b16 %v462
    %v502 = vunpack.c.l.b16 %v463
    %v503 = vunpack.c.l.b16 %v464
    %v504 = vunpack.c.l.b16 %v465
    %v505 = vunpack.c.l.b16 %v466
    %v506 = vunpack.c.l.b16 %v467
    %v507 = vunpack.c.l.b16 %v468
    %v508 = vunpack.c.l.b16 %v469
    %v509 = vunpack.c.l.b16 %v470
    %v510 = vunpack.c.l.b16 %v471
    %v511 = vunpack.c.l.b16 %v472
    %v512 = vunpack.c.l.b16 %v473
    %v513 = vpack.c.b16 %v498, %v497
    %v514 = vpack.c.b16 %v500, %v499
    %v515 = vpack.c.b16 %v502, %v501
    %v516 = vpack.c.b16 %v504, %v503
    %v517 = vpack.c.b16 %v506, %v505
    %v518 = vpack.c.b16 %v508, %v507
    %v519 = vpack.c.b16 %v510, %v509
    %v520 = vpack.c.b16 %v512, %v511
    %529 = vmatprep.subr.bf16.mxu0 0
    %530 = vmatpush1.bf16.msra.mxu0 %v520
    %531 = vmatprep.subr.bf16.mxu0 0
    %532 = vmatpush1.bf16.msra.mxu0 %v519
    %533 = vmatprep.subr.bf16.mxu0 0
    %534 = vmatpush1.bf16.msra.mxu0 %v518
    %535 = vmatprep.subr.bf16.mxu0 0
    %536 = vmatpush1.bf16.msra.mxu0 %v517
    %537 = vmatprep.subr.bf16.mxu0 0
    %538 = vmatpush1.bf16.msra.mxu0 %v516
    %539 = vmatprep.subr.bf16.mxu0 0
    %540 = vmatpush1.bf16.msra.mxu0 %v515
    %541 = vmatprep.subr.bf16.mxu0 0
    %542 = vmatpush1.bf16.msra.mxu0 %v514
    %543 = vmatprep.subr.bf16.mxu0 0
    %544 = vmatpush1.bf16.msra.mxu0 %v513
    %545 = vmatprep.subr.bf16.mxu0 0
    %546 = vmatpush2.bf16.msra.mxu0 0
    %547 = vmatprep.subr.bf16.mxu0 0
    %548 = vmatpush2.bf16.msra.mxu0 0
    %549 = vmatprep.subr.bf16.mxu0 0
    %550 = vmatpush2.bf16.msra.mxu0 0
    %551 = vmatprep.subr.bf16.mxu0 0
    %552 = vmatpush2.bf16.msra.mxu0 0
    %553 = vmatprep.subr.bf16.mxu0 0
    %554 = vmatpush2.bf16.msra.mxu0 0
    %555 = vmatprep.subr.bf16.mxu0 0
    %556 = vmatpush2.bf16.msra.mxu0 0
    %557 = vmatprep.subr.bf16.mxu0 0
    %558 = vmatpush2.bf16.msra.mxu0 0
    %559 = vmatprep.subr.bf16.mxu0 0
    %560 = vmatpush2.bf16.msra.mxu0 0
    %561 = vmatprep.mubr.bf16.mxu0 0
    %562 = vmatmul.mubr.bf16.gmra.mxu0 %v457
    %v563 = vpop.f32.mrf.mxu0
    %v564 = vadd.f32 %v479, %v563
    %v565 = vpop.f32.mrf.mxu0
    %v566 = vpop.f32.mrf.mxu0
    %v567 = vpop.f32.mrf.mxu0
    %568 = vdwg.mxu0
    %v569 = vld [vmem:[#allocation11] sm:$0xff]
    %v570 = vld [vmem:[#allocation11 + $0x8] sm:$0xff]
    %v571 = vld [vmem:[#allocation11 + $0x10] sm:$0xff]
    %v572 = vld [vmem:[#allocation11 + $0x18] sm:$0xff]
    %v573 = vld [vmem:[#allocation11 + $0x20] sm:$0xff]
    %v574 = vld [vmem:[#allocation11 + $0x28] sm:$0xff]
    %v575 = vld [vmem:[#allocation11 + $0x30] sm:$0xff]
    %v576 = vld [vmem:[#allocation11 + $0x38] sm:$0xff]
    %v577 = vld [vmem:[#allocation11 + $0x40] sm:$0xff]
    %v578 = vld [vmem:[#allocation11 + $0x48] sm:$0xff]
    %v579 = vld [vmem:[#allocation11 + $0x50] sm:$0xff]
    %v580 = vld [vmem:[#allocation11 + $0x58] sm:$0xff]
    %v581 = vld [vmem:[#allocation11 + $0x60] sm:$0xff]
    %v582 = vld [vmem:[#allocation11 + $0x68] sm:$0xff]
    %v583 = vld [vmem:[#allocation11 + $0x70] sm:$0xff]
    %v584 = vld [vmem:[#allocation11 + $0x78] sm:$0xff]
    %585 = vmatprep.subr.mxu0 0.0
    %586 = vmatpush1.msra.mxu0 %v584
    %587 = vmatprep.subr.mxu0 0.0
    %588 = vmatpush1.msra.mxu0 %v583
    %589 = vmatprep.subr.mxu0 0.0
    %590 = vmatpush1.msra.mxu0 %v582
    %591 = vmatprep.subr.mxu0 0.0
    %592 = vmatpush1.msra.mxu0 %v581
    %593 = vmatprep.subr.mxu0 0.0
    %594 = vmatpush1.msra.mxu0 %v580
    %595 = vmatprep.subr.mxu0 0.0
    %596 = vmatpush1.msra.mxu0 %v579
    %597 = vmatprep.subr.mxu0 0.0
    %598 = vmatpush1.msra.mxu0 %v578
    %599 = vmatprep.subr.mxu0 0.0
    %600 = vmatpush1.msra.mxu0 %v577
    %601 = vmatprep.subr.mxu0 0.0
    %602 = vmatpush1.msra.mxu0 %v576
    %603 = vmatprep.subr.mxu0 0.0
    %604 = vmatpush1.msra.mxu0 %v575
    %605 = vmatprep.subr.mxu0 0.0
    %606 = vmatpush1.msra.mxu0 %v574
    %607 = vmatprep.subr.mxu0 0.0
    %608 = vmatpush1.msra.mxu0 %v573
    %609 = vmatprep.subr.mxu0 0.0
    %610 = vmatpush1.msra.mxu0 %v572
    %611 = vmatprep.subr.mxu0 0.0
    %612 = vmatpush1.msra.mxu0 %v571
    %613 = vmatprep.subr.mxu0 0.0
    %614 = vmatpush1.msra.mxu0 %v570
    %615 = vmatprep.subr.mxu0 0.0
    %616 = vmatpush1.msra.mxu0 %v569
    %617 = vmatprep.subr.mxu0 0.0
    %618 = vmatpush2.msra.mxu0 0.0
    %619 = vmatprep.subr.mxu0 0.0
    %620 = vmatpush2.msra.mxu0 0.0
    %621 = vmatprep.subr.mxu0 0.0
    %622 = vmatpush2.msra.mxu0 0.0
    %623 = vmatprep.subr.mxu0 0.0
    %624 = vmatpush2.msra.mxu0 0.0
    %625 = vmatprep.subr.mxu0 0.0
    %626 = vmatpush2.msra.mxu0 0.0
    %627 = vmatprep.subr.mxu0 0.0
    %628 = vmatpush2.msra.mxu0 0.0
    %629 = vmatprep.subr.mxu0 0.0
    %630 = vmatpush2.msra.mxu0 0.0
    %631 = vmatprep.subr.mxu0 0.0
    %632 = vmatpush2.msra.mxu0 0.0
    %633 = vmatprep.subr.mxu0 0.0
    %634 = vmatpush2.msra.mxu0 0.0
    %635 = vmatprep.subr.mxu0 0.0
    %636 = vmatpush2.msra.mxu0 0.0
    %637 = vmatprep.subr.mxu0 0.0
    %638 = vmatpush2.msra.mxu0 0.0
    %639 = vmatprep.subr.mxu0 0.0
    %640 = vmatpush2.msra.mxu0 0.0
    %641 = vmatprep.subr.mxu0 0.0
    %642 = vmatpush2.msra.mxu0 0.0
    %643 = vmatprep.subr.mxu0 0.0
    %644 = vmatpush2.msra.mxu0 0.0
    %645 = vmatprep.subr.mxu0 0.0
    %646 = vmatpush2.msra.mxu0 0.0
    %647 = vmatprep.subr.mxu0 0.0
    %648 = vmatpush2.msra.mxu0 0.0
    %649 = vmatprep.mubr.f32.mxu0 0.0
    %650 = vmatmul.mubr.f32.gmra.mxu0 %v564
    %v651 = vpop.f32.mrf.mxu0
    %v652 = vadd.f32 0.0, %v651
    %v653 = vpop.f32.mrf.mxu0
    %654 = vdwg.mxu0
    %v655 = vsub.f32 %v564, %v652
    %v656 = vmul.f32 %v655, %v655
    %657 = vmatprep.subr.mxu0 0.0
    %658 = vmatpush1.msra.mxu0 %v584
    %659 = vmatprep.subr.mxu0 0.0
    %660 = vmatpush1.msra.mxu0 %v583
    %661 = vmatprep.subr.mxu0 0.0
    %662 = vmatpush1.msra.mxu0 %v582
    %663 = vmatprep.subr.mxu0 0.0
    %664 = vmatpush1.msra.mxu0 %v581
    %665 = vmatprep.subr.mxu0 0.0
    %666 = vmatpush1.msra.mxu0 %v580
    %667 = vmatprep.subr.mxu0 0.0
    %668 = vmatpush1.msra.mxu0 %v579
    %669 = vmatprep.subr.mxu0 0.0
    %670 = vmatpush1.msra.mxu0 %v578
    %671 = vmatprep.subr.mxu0 0.0
    %672 = vmatpush1.msra.mxu0 %v577
    %673 = vmatprep.subr.mxu0 0.0
    %674 = vmatpush1.msra.mxu0 %v576
    %675 = vmatprep.subr.mxu0 0.0
    %676 = vmatpush1.msra.mxu0 %v575
    %677 = vmatprep.subr.mxu0 0.0
    %678 = vmatpush1.msra.mxu0 %v574
    %679 = vmatprep.subr.mxu0 0.0
    %680 = vmatpush1.msra.mxu0 %v573
    %681 = vmatprep.subr.mxu0 0.0
    %682 = vmatpush1.msra.mxu0 %v572
    %683 = vmatprep.subr.mxu0 0.0
    %684 = vmatpush1.msra.mxu0 %v571
    %685 = vmatprep.subr.mxu0 0.0
    %686 = vmatpush1.msra.mxu0 %v570
    %687 = vmatprep.subr.mxu0 0.0
    %688 = vmatpush1.msra.mxu0 %v569
    %689 = vmatprep.subr.mxu0 0.0
    %690 = vmatpush2.msra.mxu0 0.0
    %691 = vmatprep.subr.mxu0 0.0
    %692 = vmatpush2.msra.mxu0 0.0
    %693 = vmatprep.subr.mxu0 0.0
    %694 = vmatpush2.msra.mxu0 0.0
    %695 = vmatprep.subr.mxu0 0.0
    %696 = vmatpush2.msra.mxu0 0.0
    %697 = vmatprep.subr.mxu0 0.0
    %698 = vmatpush2.msra.mxu0 0.0
    %699 = vmatprep.subr.mxu0 0.0
    %700 = vmatpush2.msra.mxu0 0.0
    %701 = vmatprep.subr.mxu0 0.0
    %702 = vmatpush2.msra.mxu0 0.0
    %703 = vmatprep.subr.mxu0 0.0
    %704 = vmatpush2.msra.mxu0 0.0
    %705 = vmatprep.subr.mxu0 0.0
    %706 = vmatpush2.msra.mxu0 0.0
    %707 = vmatprep.subr.mxu0 0.0
    %708 = vmatpush2.msra.mxu0 0.0
    %709 = vmatprep.subr.mxu0 0.0
    %710 = vmatpush2.msra.mxu0 0.0
    %711 = vmatprep.subr.mxu0 0.0
    %712 = vmatpush2.msra.mxu0 0.0
    %713 = vmatprep.subr.mxu0 0.0
    %714 = vmatpush2.msra.mxu0 0.0
    %715 = vmatprep.subr.mxu0 0.0
    %716 = vmatpush2.msra.mxu0 0.0
    %717 = vmatprep.subr.mxu0 0.0
    %718 = vmatpush2.msra.mxu0 0.0
    %719 = vmatprep.subr.mxu0 0.0
    %720 = vmatpush2.msra.mxu0 0.0
    %721 = vmatprep.mubr.f32.mxu0 0.0
    %722 = vmatmul.mubr.f32.gmra.mxu0 %v656
    %v723 = vpop.f32.mrf.mxu0
    %v724 = vadd.f32 1e-05, %v723
    %v725 = vpop.f32.mrf.mxu0
    %726 = vdwg.mxu0
    %v727 = vrsqrt.pop %v724
    %v728 = vmul.f32 %v655, %v727
    %v729 = vld [vmem:[%s6] sm:$0x1]
    %v731 = vlaneseq
    %v732 = vshrl.u32 %v731, 7
    %v733 = vsub.s32 0, %v732
    %v734 = vrot.slane %v729, %v733
    %v736 = vmul.f32 %v728, %v734
    %v737 = vld [vmem:[%s7] sm:$0x1]
    %v739 = vlaneseq
    %v740 = vshrl.u32 %v739, 7
    %v741 = vsub.s32 0, %v740
    %v742 = vrot.slane %v737, %v741
    %v744 = vadd.f32 %v736, %v742
    %v745 = vmul.f32 %v744, 0.5
    %v746 = vmul.f32 %v744, 0.70710677
    %vm747 = vcmp.ge.f32.partialorder %v746, 0.0
    %v748 = vsel %vm747, 1.0, -1.0
    %v749 = vand.u32 2147483647, %v746
    %v750 = vmul.f32 %v749, 0.3275911
    %v751 = vadd.f32 %v750, 1.0
    %v752 = vrcp.pop %v751
    %v753 = vmul.f32 1.0, %v752
    %v754 = vmul.f32 %v753, 1.0614054
    %v755 = vadd.f32 %v754, -1.4531521
    %v756 = vmul.f32 %v755, %v753
    %v757 = vadd.f32 %v756, 1.4214138
    %v758 = vmul.f32 %v757, %v753
    %v759 = vadd.f32 %v758, -0.28449672
    %v760 = vmul.f32 %v759, %v753
    %v761 = vadd.f32 %v760, 0.2548296
    %v762 = vmul.f32 %v761, %v753
    %v763 = vsub.f32 0.0, %v749
    %v764 = vmul.f32 %v763, %v749
    %v765 = vmul.f32 %v764, 1.442695
    %v766 = vpow.pop %v765
    %v767 = vmul.f32 %v762, %v766
    %v768 = vsub.f32 1.0, %v767
    %v769 = vmul.f32 %v748, %v768
    %v770 = vadd.f32 %v769, 1.0
    %v771 = vmul.f32 %v745, %v770
    %v772 = vpack.c.bf16 %v771, %v771
    %v773 = vld [vmem:[#allocation10] sm:$0xff]
    %v774 = vld [vmem:[#allocation10 + $0x8] sm:$0xff]
    %v775 = vld [vmem:[#allocation10 + $0x10] sm:$0xff]
    %v776 = vld [vmem:[#allocation10 + $0x18] sm:$0xff]
    %v777 = vld [vmem:[#allocation10 + $0x20] sm:$0xff]
    %v778 = vld [vmem:[#allocation10 + $0x28] sm:$0xff]
    %v779 = vld [vmem:[#allocation10 + $0x30] sm:$0xff]
    %v780 = vld [vmem:[#allocation10 + $0x38] sm:$0xff]
    %v781 = vld [vmem:[#allocation10 + $0x40] sm:$0xff]
    %v782 = vld [vmem:[#allocation10 + $0x48] sm:$0xff]
    %v783 = vld [vmem:[#allocation10 + $0x50] sm:$0xff]
    %v784 = vld [vmem:[#allocation10 + $0x58] sm:$0xff]
    %v785 = vld [vmem:[#allocation10 + $0x60] sm:$0xff]
    %v786 = vld [vmem:[#allocation10 + $0x68] sm:$0xff]
    %v787 = vld [vmem:[#allocation10 + $0x70] sm:$0xff]
    %v788 = vld [vmem:[#allocation10 + $0x78] sm:$0xff]
    %v789 = vld [vmem:[%s9] sm:$0x3]
    %v791 = vlaneseq
    %v792 = vshrl.u32 %v791, 7
    %v793 = vsub.s32 0, %v792
    %v794 = vrot.slane %v789, %v793
    %v795 = vlaneseq
    %v796 = vshrl.u32 %v795, 7
    %v797 = vsub.s32 1, %v796
    %v798 = vrot.slane %v789, %v797
    %v817 = vunpack.c.l.b16 %v773
    %v818 = vunpack.c.h.b16 %v773
    %v819 = vunpack.c.l.b16 %v774
    %v820 = vunpack.c.h.b16 %v774
    %v821 = vunpack.c.l.b16 %v775
    %v822 = vunpack.c.h.b16 %v775
    %v823 = vunpack.c.l.b16 %v776
    %v824 = vunpack.c.h.b16 %v776
    %v825 = vunpack.c.l.b16 %v777
    %v826 = vunpack.c.h.b16 %v777
    %v827 = vunpack.c.l.b16 %v778
    %v828 = vunpack.c.h.b16 %v778
    %v829 = vunpack.c.l.b16 %v779
    %v830 = vunpack.c.h.b16 %v779
    %v831 = vunpack.c.l.b16 %v780
    %v832 = vunpack.c.h.b16 %v780
    %v833 = vunpack.c.l.b16 %v781
    %v834 = vunpack.c.h.b16 %v781
    %v835 = vunpack.c.l.b16 %v782
    %v836 = vunpack.c.h.b16 %v782
    %v837 = vunpack.c.l.b16 %v783
    %v838 = vunpack.c.h.b16 %v783
    %v839 = vunpack.c.l.b16 %v784
    %v840 = vunpack.c.h.b16 %v784
    %v841 = vunpack.c.l.b16 %v785
    %v842 = vunpack.c.h.b16 %v785
    %v843 = vunpack.c.l.b16 %v786
    %v844 = vunpack.c.h.b16 %v786
    %v845 = vunpack.c.l.b16 %v787
    %v846 = vunpack.c.h.b16 %v787
    %v847 = vunpack.c.l.b16 %v788
    %v848 = vunpack.c.h.b16 %v788
    %v849 = vpack.c.b16 %v819, %v817
    %v850 = vpack.c.b16 %v820, %v818
    %v851 = vpack.c.b16 %v823, %v821
    %v852 = vpack.c.b16 %v824, %v822
    %v853 = vpack.c.b16 %v827, %v825
    %v854 = vpack.c.b16 %v828, %v826
    %v855 = vpack.c.b16 %v831, %v829
    %v856 = vpack.c.b16 %v832, %v830
    %v857 = vpack.c.b16 %v835, %v833
    %v858 = vpack.c.b16 %v836, %v834
    %v859 = vpack.c.b16 %v839, %v837
    %v860 = vpack.c.b16 %v840, %v838
    %v861 = vpack.c.b16 %v843, %v841
    %v862 = vpack.c.b16 %v844, %v842
    %v863 = vpack.c.b16 %v847, %v845
    %v864 = vpack.c.b16 %v848, %v846
    %881 = vmatprep.subr.bf16.mxu0 %v864
    %882 = vmatpush1.bf16.msra.mxu0 %v863
    %883 = vmatprep.subr.bf16.mxu0 %v862
    %884 = vmatpush1.bf16.msra.mxu0 %v861
    %885 = vmatprep.subr.bf16.mxu0 %v860
    %886 = vmatpush1.bf16.msra.mxu0 %v859
    %887 = vmatprep.subr.bf16.mxu0 %v858
    %888 = vmatpush1.bf16.msra.mxu0 %v857
    %889 = vmatprep.subr.bf16.mxu0 %v856
    %890 = vmatpush1.bf16.msra.mxu0 %v855
    %891 = vmatprep.subr.bf16.mxu0 %v854
    %892 = vmatpush1.bf16.msra.mxu0 %v853
    %893 = vmatprep.subr.bf16.mxu0 %v852
    %894 = vmatpush1.bf16.msra.mxu0 %v851
    %895 = vmatprep.subr.bf16.mxu0 %v850
    %896 = vmatpush1.bf16.msra.mxu0 %v849
    %897 = vmatprep.subr.bf16.mxu0 0
    %898 = vmatpush2.bf16.msra.mxu0 0
    %899 = vmatprep.subr.bf16.mxu0 0
    %900 = vmatpush2.bf16.msra.mxu0 0
    %901 = vmatprep.subr.bf16.mxu0 0
    %902 = vmatpush2.bf16.msra.mxu0 0
    %903 = vmatprep.subr.bf16.mxu0 0
    %904 = vmatpush2.bf16.msra.mxu0 0
    %905 = vmatprep.subr.bf16.mxu0 0
    %906 = vmatpush2.bf16.msra.mxu0 0
    %907 = vmatprep.subr.bf16.mxu0 0
    %908 = vmatpush2.bf16.msra.mxu0 0
    %909 = vmatprep.subr.bf16.mxu0 0
    %910 = vmatpush2.bf16.msra.mxu0 0
    %911 = vmatprep.subr.bf16.mxu0 0
    %912 = vmatpush2.bf16.msra.mxu0 0
    %913 = vmatprep.mubr.bf16.mxu0 0
    %914 = vmatmul.mubr.bf16.gmra.mxu0 %v772
    %v915 = vpop.f32.mrf.mxu0
    %v916 = vadd.f32 %v794, %v915
    %v917 = vpop.f32.mrf.mxu0
    %v918 = vadd.f32 %v798, %v917
    %v919 = vpop.f32.mrf.mxu0
    %v920 = vpop.f32.mrf.mxu0
    %921 = vdwg.mxu0
    %v922 = vld [vmem:[#allocation13] sm:$0xff]
    %v923 = vld [vmem:[#allocation13 + $0x8] sm:$0xff]
    %v924 = vld [vmem:[#allocation13 + $0x10] sm:$0xff]
    %v925 = vld [vmem:[#allocation13 + $0x18] sm:$0xff]
    %v926 = vld [vmem:[#allocation13 + $0x20] sm:$0xff]
    %v927 = vld [vmem:[#allocation13 + $0x28] sm:$0xff]
    %v928 = vld [vmem:[#allocation13 + $0x30] sm:$0xff]
    %v929 = vld [vmem:[#allocation13 + $0x38] sm:$0xff]
    %v931 = vrot.slane %v916, 4
    %vm933 = vcmask 1043456
    %v934 = vsel %vm933, %v916, %v931
    %v935 = vmul.f32 %v934, %v922
    %v936 = vmul.f32 %v934, %v923
    %v937 = vmul.f32 %v934, %v924
    %v938 = vmul.f32 %v934, %v925
    %v939 = vmul.f32 %v934, %v926
    %v940 = vmul.f32 %v934, %v927
    %v941 = vmul.f32 %v934, %v928
    %v942 = vmul.f32 %v934, %v929
    %v943 = vpack.c.bf16 %v936, %v935
    %v944 = vpack.c.bf16 %v938, %v937
    %v945 = vpack.c.bf16 %v940, %v939
    %v946 = vpack.c.bf16 %v942, %v941
    %v948 = vrot.slane %v918, 4
    %v950 = vsel %vm933, %v918, %v948
    %v951 = vmul.f32 %v950, %v922
    %v952 = vmul.f32 %v950, %v923
    %v953 = vmul.f32 %v950, %v924
    %v954 = vmul.f32 %v950, %v925
    %v955 = vmul.f32 %v950, %v926
    %v956 = vmul.f32 %v950, %v927
    %v957 = vmul.f32 %v950, %v928
    %v958 = vmul.f32 %v950, %v929
    %v959 = vpack.c.bf16 %v952, %v951
    %v960 = vpack.c.bf16 %v954, %v953
    %v961 = vpack.c.bf16 %v956, %v955
    %v962 = vpack.c.bf16 %v958, %v957
    %v963 = vpack.c.bf16 %v300, %v297
    %v964 = vpack.c.bf16 %v308, %v305
    %v965 = vpack.c.bf16 %v316, %v313
    %v966 = vpack.c.bf16 %v324, %v321
    %v967 = vpack.c.bf16 %v332, %v329
    %v968 = vpack.c.bf16 %v340, %v337
    %v969 = vpack.c.bf16 %v348, %v345
    %v970 = vpack.c.bf16 %v356, %v353
    %v971 = vpack.c.bf16 %v364, %v361
    %v972 = vpack.c.bf16 %v372, %v369
    %v973 = vpack.c.bf16 %v380, %v377
    %v974 = vpack.c.bf16 %v388, %v385
    %v975 = vpack.c.bf16 %v393, %v393
    %976 = vmatprep.subr.bf16.mxu0 0
    %977 = vmatpush1.bf16.xpose.msra.mxu0 0
    %978 = vmatprep.subr.bf16.mxu0 0
    %979 = vmatpush1.bf16.xpose.msra.mxu0 0
    %980 = vmatprep.subr.bf16.mxu0 0
    %981 = vmatpush1.bf16.xpose.msra.mxu0 0
    %982 = vmatprep.subr.bf16.mxu0 0
    %983 = vmatpush1.bf16.xpose.msra.mxu0 0
    %984 = vmatprep.subr.bf16.mxu0 0
    %985 = vmatpush1.bf16.xpose.msra.mxu0 %v946
    %986 = vmatprep.subr.bf16.mxu0 0
    %987 = vmatpush1.bf16.xpose.msra.mxu0 %v945
    %988 = vmatprep.subr.bf16.mxu0 0
    %989 = vmatpush1.bf16.xpose.msra.mxu0 %v944
    %990 = vmatprep.subr.bf16.mxu0 0
    %991 = vmatpush1.bf16.xpose.msra.mxu0 %v943
    %992 = vmatprep.subr.bf16.mxu0 0
    %993 = vmatpush2.bf16.xpose.msra.mxu0 0
    %994 = vmatprep.subr.bf16.mxu0 0
    %995 = vmatpush2.bf16.xpose.msra.mxu0 0
    %996 = vmatprep.subr.bf16.mxu0 0
    %997 = vmatpush2.bf16.xpose.msra.mxu0 0
    %998 = vmatprep.subr.bf16.mxu0 0
    %999 = vmatpush2.bf16.xpose.msra.mxu0 0
    %1000 = vmatprep.subr.bf16.mxu0 0
    %1001 = vmatpush2.bf16.xpose.msra.mxu0 0
    %1002 = vmatprep.subr.bf16.mxu0 0
    %1003 = vmatpush2.bf16.xpose.msra.mxu0 0
    %1004 = vmatprep.subr.bf16.mxu0 0
    %1005 = vmatpush2.bf16.xpose.msra.mxu0 0
    %1006 = vmatprep.subr.bf16.mxu0 0
    %1007 = vmatpush2.bf16.xpose.msra.mxu0 0
    %1008 = vmatprep.mubr.bf16.mxu0 0
    %1009 = vmatmul.mubr.bf16.gmra.mxu0 %v963
    %v1010 = vpop.f32.mrf.mxu0
    %v1011 = vadd.f32 0.0, %v1010
    %v1012 = vpop.f32.mrf.mxu0
    %v1013 = vpop.f32.mrf.mxu0
    %v1014 = vadd.f32 0.0, %v1013
    %v1015 = vpop.f32.mrf.mxu0
    %1016 = vmatprep.mubr.bf16.mxu0 0
    %1017 = vmatmul.mubr.bf16.gmra.mxu0 %v964
    %v1018 = vpop.f32.mrf.mxu0
    %v1019 = vadd.f32 0.0, %v1018
    %v1020 = vpop.f32.mrf.mxu0
    %v1021 = vpop.f32.mrf.mxu0
    %v1022 = vadd.f32 0.0, %v1021
    %v1023 = vpop.f32.mrf.mxu0
    %1024 = vmatprep.mubr.bf16.mxu0 0
    %1025 = vmatmul.mubr.bf16.gmra.mxu0 %v965
    %v1026 = vpop.f32.mrf.mxu0
    %v1027 = vadd.f32 0.0, %v1026
    %v1028 = vpop.f32.mrf.mxu0
    %v1029 = vpop.f32.mrf.mxu0
    %v1030 = vadd.f32 0.0, %v1029
    %v1031 = vpop.f32.mrf.mxu0
    %1032 = vmatprep.mubr.bf16.mxu0 0
    %1033 = vmatmul.mubr.bf16.gmra.mxu0 %v966
    %v1034 = vpop.f32.mrf.mxu0
    %v1035 = vadd.f32 0.0, %v1034
    %v1036 = vpop.f32.mrf.mxu0
    %v1037 = vpop.f32.mrf.mxu0
    %v1038 = vadd.f32 0.0, %v1037
    %v1039 = vpop.f32.mrf.mxu0
    %1040 = vmatprep.mubr.bf16.mxu0 0
    %1041 = vmatmul.mubr.bf16.gmra.mxu0 %v967
    %v1042 = vpop.f32.mrf.mxu0
    %v1043 = vadd.f32 0.0, %v1042
    %v1044 = vpop.f32.mrf.mxu0
    %v1045 = vpop.f32.mrf.mxu0
    %v1046 = vadd.f32 0.0, %v1045
    %v1047 = vpop.f32.mrf.mxu0
    %1048 = vmatprep.mubr.bf16.mxu0 0
    %1049 = vmatmul.mubr.bf16.gmra.mxu0 %v968
    %v1050 = vpop.f32.mrf.mxu0
    %v1051 = vadd.f32 0.0, %v1050
    %v1052 = vpop.f32.mrf.mxu0
    %v1053 = vpop.f32.mrf.mxu0
    %v1054 = vadd.f32 0.0, %v1053
    %v1055 = vpop.f32.mrf.mxu0
    %1056 = vmatprep.mubr.bf16.mxu0 0
    %1057 = vmatmul.mubr.bf16.gmra.mxu0 %v969
    %v1058 = vpop.f32.mrf.mxu0
    %v1059 = vadd.f32 0.0, %v1058
    %v1060 = vpop.f32.mrf.mxu0
    %v1061 = vpop.f32.mrf.mxu0
    %v1062 = vadd.f32 0.0, %v1061
    %v1063 = vpop.f32.mrf.mxu0
    %1064 = vmatprep.mubr.bf16.mxu0 0
    %1065 = vmatmul.mubr.bf16.gmra.mxu0 %v970
    %v1066 = vpop.f32.mrf.mxu0
    %v1067 = vadd.f32 0.0, %v1066
    %v1068 = vpop.f32.mrf.mxu0
    %v1069 = vpop.f32.mrf.mxu0
    %v1070 = vadd.f32 0.0, %v1069
    %v1071 = vpop.f32.mrf.mxu0
    %1072 = vmatprep.mubr.bf16.mxu0 0
    %1073 = vmatmul.mubr.bf16.gmra.mxu0 %v971
    %v1074 = vpop.f32.mrf.mxu0
    %v1075 = vadd.f32 0.0, %v1074
    %v1076 = vpop.f32.mrf.mxu0
    %v1077 = vpop.f32.mrf.mxu0
    %v1078 = vadd.f32 0.0, %v1077
    %v1079 = vpop.f32.mrf.mxu0
    %1080 = vmatprep.mubr.bf16.mxu0 0
    %1081 = vmatmul.mubr.bf16.gmra.mxu0 %v972
    %v1082 = vpop.f32.mrf.mxu0
    %v1083 = vadd.f32 0.0, %v1082
    %v1084 = vpop.f32.mrf.mxu0
    %v1085 = vpop.f32.mrf.mxu0
    %v1086 = vadd.f32 0.0, %v1085
    %v1087 = vpop.f32.mrf.mxu0
    %1088 = vmatprep.mubr.bf16.mxu0 0
    %1089 = vmatmul.mubr.bf16.gmra.mxu0 %v973
    %v1090 = vpop.f32.mrf.mxu0
    %v1091 = vadd.f32 0.0, %v1090
    %v1092 = vpop.f32.mrf.mxu0
    %v1093 = vpop.f32.mrf.mxu0
    %v1094 = vadd.f32 0.0, %v1093
    %v1095 = vpop.f32.mrf.mxu0
    %1096 = vmatprep.mubr.bf16.mxu0 0
    %1097 = vmatmul.mubr.bf16.gmra.mxu0 %v974
    %v1098 = vpop.f32.mrf.mxu0
    %v1099 = vadd.f32 0.0, %v1098
    %v1100 = vpop.f32.mrf.mxu0
    %v1101 = vpop.f32.mrf.mxu0
    %v1102 = vadd.f32 0.0, %v1101
    %v1103 = vpop.f32.mrf.mxu0
    %1104 = vmatprep.mubr.bf16.mxu0 0
    %1105 = vmatmul.mubr.bf16.gmra.mxu0 %v975
    %v1106 = vpop.f32.mrf.mxu0
    %v1107 = vadd.f32 0.0, %v1106
    %v1108 = vpop.f32.mrf.mxu0
    %v1109 = vpop.f32.mrf.mxu0
    %v1110 = vpop.f32.mrf.mxu0
    %1111 = vdwg.mxu0
    %vm1112 = vcmask 523264
    %v1113 = vsel %vm1112, %v1011, -inf
    %1114 = vmax.xlane.f32.xlu0 %v1113
    %v1115 = vpop.xlane.xlu0 %1114
    %v1116 = vsel %vm1112, %v1014, -inf
    %1117 = vmax.xlane.f32.xlu0 %v1116
    %v1118 = vpop.xlane.xlu0 %1117
    %v1119 = vsel %vm1112, %v1019, -inf
    %1120 = vmax.xlane.f32.xlu0 %v1119
    %v1121 = vpop.xlane.xlu0 %1120
    %v1122 = vsel %vm1112, %v1022, -inf
    %1123 = vmax.xlane.f32.xlu0 %v1122
    %v1124 = vpop.xlane.xlu0 %1123
    %v1125 = vsel %vm1112, %v1027, -inf
    %1126 = vmax.xlane.f32.xlu0 %v1125
    %v1127 = vpop.xlane.xlu0 %1126
    %v1128 = vsel %vm1112, %v1030, -inf
    %1129 = vmax.xlane.f32.xlu0 %v1128
    %v1130 = vpop.xlane.xlu0 %1129
    %v1131 = vsel %vm1112, %v1035, -inf
    %1132 = vmax.xlane.f32.xlu0 %v1131
    %v1133 = vpop.xlane.xlu0 %1132
    %v1134 = vsel %vm1112, %v1038, -inf
    %1135 = vmax.xlane.f32.xlu0 %v1134
    %v1136 = vpop.xlane.xlu0 %1135
    %v1137 = vsel %vm1112, %v1043, -inf
    %1138 = vmax.xlane.f32.xlu0 %v1137
    %v1139 = vpop.xlane.xlu0 %1138
    %v1140 = vsel %vm1112, %v1046, -inf
    %1141 = vmax.xlane.f32.xlu0 %v1140
    %v1142 = vpop.xlane.xlu0 %1141
    %v1143 = vsel %vm1112, %v1051, -inf
    %1144 = vmax.xlane.f32.xlu0 %v1143
    %v1145 = vpop.xlane.xlu0 %1144
    %v1146 = vsel %vm1112, %v1054, -inf
    %1147 = vmax.xlane.f32.xlu0 %v1146
    %v1148 = vpop.xlane.xlu0 %1147
    %v1149 = vsel %vm1112, %v1059, -inf
    %1150 = vmax.xlane.f32.xlu0 %v1149
    %v1151 = vpop.xlane.xlu0 %1150
    %v1152 = vsel %vm1112, %v1062, -inf
    %1153 = vmax.xlane.f32.xlu0 %v1152
    %v1154 = vpop.xlane.xlu0 %1153
    %v1155 = vsel %vm1112, %v1067, -inf
    %1156 = vmax.xlane.f32.xlu0 %v1155
    %v1157 = vpop.xlane.xlu0 %1156
    %v1158 = vsel %vm1112, %v1070, -inf
    %1159 = vmax.xlane.f32.xlu0 %v1158
    %v1160 = vpop.xlane.xlu0 %1159
    %v1161 = vsel %vm1112, %v1075, -inf
    %1162 = vmax.xlane.f32.xlu0 %v1161
    %v1163 = vpop.xlane.xlu0 %1162
    %v1164 = vsel %vm1112, %v1078, -inf
    %1165 = vmax.xlane.f32.xlu0 %v1164
    %v1166 = vpop.xlane.xlu0 %1165
    %v1167 = vsel %vm1112, %v1083, -inf
    %1168 = vmax.xlane.f32.xlu0 %v1167
    %v1169 = vpop.xlane.xlu0 %1168
    %v1170 = vsel %vm1112, %v1086, -inf
    %1171 = vmax.xlane.f32.xlu0 %v1170
    %v1172 = vpop.xlane.xlu0 %1171
    %v1173 = vsel %vm1112, %v1091, -inf
    %1174 = vmax.xlane.f32.xlu0 %v1173
    %v1175 = vpop.xlane.xlu0 %1174
    %v1176 = vsel %vm1112, %v1094, -inf
    %1177 = vmax.xlane.f32.xlu0 %v1176
    %v1178 = vpop.xlane.xlu0 %1177
    %v1179 = vsel %vm1112, %v1099, -inf
    %1180 = vmax.xlane.f32.xlu0 %v1179
    %v1181 = vpop.xlane.xlu0 %1180
    %v1182 = vsel %vm1112, %v1102, -inf
    %1183 = vmax.xlane.f32.xlu0 %v1182
    %v1184 = vpop.xlane.xlu0 %1183
    %vm1185 = vcmask 519168
    %v1186 = vsel %vm1185, %v1107, -inf
    %1187 = vmax.xlane.f32.xlu0 %v1186
    %v1188 = vpop.xlane.xlu0 %1187
    %v1189 = vsub.f32 %v1011, %v1115
    %v1190 = vsub.f32 %v1014, %v1118
    %v1191 = vsub.f32 %v1019, %v1121
    %v1192 = vsub.f32 %v1022, %v1124
    %v1193 = vsub.f32 %v1027, %v1127
    %v1194 = vsub.f32 %v1030, %v1130
    %v1195 = vsub.f32 %v1035, %v1133
    %v1196 = vsub.f32 %v1038, %v1136
    %v1197 = vsub.f32 %v1043, %v1139
    %v1198 = vsub.f32 %v1046, %v1142
    %v1199 = vsub.f32 %v1051, %v1145
    %v1200 = vsub.f32 %v1054, %v1148
    %v1201 = vsub.f32 %v1059, %v1151
    %v1202 = vsub.f32 %v1062, %v1154
    %v1203 = vsub.f32 %v1067, %v1157
    %v1204 = vsub.f32 %v1070, %v1160
    %v1205 = vsub.f32 %v1075, %v1163
    %v1206 = vsub.f32 %v1078, %v1166
    %v1207 = vsub.f32 %v1083, %v1169
    %v1208 = vsub.f32 %v1086, %v1172
    %v1209 = vsub.f32 %v1091, %v1175
    %v1210 = vsub.f32 %v1094, %v1178
    %v1211 = vsub.f32 %v1099, %v1181
    %v1212 = vsub.f32 %v1102, %v1184
    %v1213 = vsub.f32 %v1107, %v1188
    %v1214 = vmul.f32 %v1189, 1.442695
    %v1215 = vpow.pop %v1214
    %v1216 = vmul.f32 %v1190, 1.442695
    %v1217 = vpow.pop %v1216
    %v1218 = vmul.f32 %v1191, 1.442695
    %v1219 = vpow.pop %v1218
    %v1220 = vmul.f32 %v1192, 1.442695
    %v1221 = vpow.pop %v1220
    %v1222 = vmul.f32 %v1193, 1.442695
    %v1223 = vpow.pop %v1222
    %v1224 = vmul.f32 %v1194, 1.442695
    %v1225 = vpow.pop %v1224
    %v1226 = vmul.f32 %v1195, 1.442695
    %v1227 = vpow.pop %v1226
    %v1228 = vmul.f32 %v1196, 1.442695
    %v1229 = vpow.pop %v1228
    %v1230 = vmul.f32 %v1197, 1.442695
    %v1231 = vpow.pop %v1230
    %v1232 = vmul.f32 %v1198, 1.442695
    %v1233 = vpow.pop %v1232
    %v1234 = vmul.f32 %v1199, 1.442695
    %v1235 = vpow.pop %v1234
    %v1236 = vmul.f32 %v1200, 1.442695
    %v1237 = vpow.pop %v1236
    %v1238 = vmul.f32 %v1201, 1.442695
    %v1239 = vpow.pop %v1238
    %v1240 = vmul.f32 %v1202, 1.442695
    %v1241 = vpow.pop %v1240
    %v1242 = vmul.f32 %v1203, 1.442695
    %v1243 = vpow.pop %v1242
    %v1244 = vmul.f32 %v1204, 1.442695
    %v1245 = vpow.pop %v1244
    %v1246 = vmul.f32 %v1205, 1.442695
    %v1247 = vpow.pop %v1246
    %v1248 = vmul.f32 %v1206, 1.442695
    %v1249 = vpow.pop %v1248
    %v1250 = vmul.f32 %v1207, 1.442695
    %v1251 = vpow.pop %v1250
    %v1252 = vmul.f32 %v1208, 1.442695
    %v1253 = vpow.pop %v1252
    %v1254 = vmul.f32 %v1209, 1.442695
    %v1255 = vpow.pop %v1254
    %v1256 = vmul.f32 %v1210, 1.442695
    %v1257 = vpow.pop %v1256
    %v1258 = vmul.f32 %v1211, 1.442695
    %v1259 = vpow.pop %v1258
    %v1260 = vmul.f32 %v1212, 1.442695
    %v1261 = vpow.pop %v1260
    %v1262 = vmul.f32 %v1213, 1.442695
    %v1263 = vpow.pop %v1262
    %v1264 = vpack.c.bf16 %v1217, %v1215
    %v1265 = vpack.c.bf16 %v1221, %v1219
    %v1266 = vpack.c.bf16 %v1225, %v1223
    %v1267 = vpack.c.bf16 %v1229, %v1227
    %v1268 = vpack.c.bf16 %v1233, %v1231
    %v1269 = vpack.c.bf16 %v1237, %v1235
    %v1270 = vpack.c.bf16 %v1241, %v1239
    %v1271 = vpack.c.bf16 %v1245, %v1243
    %v1272 = vpack.c.bf16 %v1249, %v1247
    %v1273 = vpack.c.bf16 %v1253, %v1251
    %v1274 = vpack.c.bf16 %v1257, %v1255
    %v1275 = vpack.c.bf16 %v1261, %v1259
    %v1276 = vpack.c.bf16 %v1263, %v1263
    %v1277 = vld [vmem:[#allocation14] sm:$0xf]
    %v1278 = vld [vmem:[#allocation14 + $0x4] sm:$0xf]
    %v1279 = vld [vmem:[#allocation14 + $0x8] sm:$0xf]
    %v1280 = vld [vmem:[#allocation14 + $0xc] sm:$0xf]
    %v1281 = vld [vmem:[#allocation14 + $0x10] sm:$0xf]
    %v1282 = vld [vmem:[#allocation14 + $0x14] sm:$0xf]
    %v1283 = vld [vmem:[#allocation14 + $0x18] sm:$0xf]
    %v1284 = vld [vmem:[#allocation14 + $0x1c] sm:$0xf]
    %v1293 = vunpack.c.l.b16 %v1277
    %v1294 = vunpack.c.l.b16 %v1278
    %v1295 = vunpack.c.l.b16 %v1279
    %v1296 = vunpack.c.l.b16 %v1280
    %v1297 = vunpack.c.l.b16 %v1281
    %v1298 = vunpack.c.l.b16 %v1282
    %v1299 = vunpack.c.l.b16 %v1283
    %v1300 = vunpack.c.l.b16 %v1284
    %v1301 = vpack.c.b16 %v1294, %v1293
    %v1302 = vpack.c.b16 %v1296, %v1295
    %v1303 = vpack.c.b16 %v1298, %v1297
    %v1304 = vpack.c.b16 %v1300, %v1299
    %v1310 = vsel %vm1112, %v1264, 0
    %v1313 = vsel %vm1112, %v1265, 0
    %v1316 = vsel %vm1112, %v1266, 0
    %v1319 = vsel %vm1112, %v1267, 0
    %v1322 = vsel %vm1112, %v1268, 0
    %v1325 = vsel %vm1112, %v1269, 0
    %v1328 = vsel %vm1112, %v1270, 0
    %v1331 = vsel %vm1112, %v1271, 0
    %v1334 = vsel %vm1112, %v1272, 0
    %v1337 = vsel %vm1112, %v1273, 0
    %v1340 = vsel %vm1112, %v1274, 0
    %v1343 = vsel %vm1112, %v1275, 0
    %v1346 = vsel %vm1112, %v1276, 0
    %1348 = vmatprep.subr.bf16.mxu0 0
    %1349 = vmatpush1.bf16.msra.mxu0 0
    %1350 = vmatprep.subr.bf16.mxu0 0
    %1351 = vmatpush1.bf16.msra.mxu0 0
    %1352 = vmatprep.subr.bf16.mxu0 0
    %1353 = vmatpush1.bf16.msra.mxu0 0
    %1354 = vmatprep.subr.bf16.mxu0 0
    %1355 = vmatpush1.bf16.msra.mxu0 0
    %1356 = vmatprep.subr.bf16.mxu0 0
    %1357 = vmatpush1.bf16.msra.mxu0 %v1304
    %1358 = vmatprep.subr.bf16.mxu0 0
    %1359 = vmatpush1.bf16.msra.mxu0 %v1303
    %1360 = vmatprep.subr.bf16.mxu0 0
    %1361 = vmatpush1.bf16.msra.mxu0 %v1302
    %1362 = vmatprep.subr.bf16.mxu0 0
    %1363 = vmatpush1.bf16.msra.mxu0 %v1301
    %1364 = vmatprep.subr.bf16.mxu0 0
    %1365 = vmatpush2.bf16.msra.mxu0 0
    %1366 = vmatprep.subr.bf16.mxu0 0
    %1367 = vmatpush2.bf16.msra.mxu0 0
    %1368 = vmatprep.subr.bf16.mxu0 0
    %1369 = vmatpush2.bf16.msra.mxu0 0
    %1370 = vmatprep.subr.bf16.mxu0 0
    %1371 = vmatpush2.bf16.msra.mxu0 0
    %1372 = vmatprep.subr.bf16.mxu0 0
    %1373 = vmatpush2.bf16.msra.mxu0 0
    %1374 = vmatprep.subr.bf16.mxu0 0
    %1375 = vmatpush2.bf16.msra.mxu0 0
    %1376 = vmatprep.subr.bf16.mxu0 0
    %1377 = vmatpush2.bf16.msra.mxu0 0
    %1378 = vmatprep.subr.bf16.mxu0 0
    %1379 = vmatpush2.bf16.msra.mxu0 0
    %1380 = vmatprep.mubr.bf16.mxu0 0
    %1381 = vmatmul.mubr.bf16.gmra.mxu0 %v1310
    %v1382 = vpop.f32.mrf.mxu0
    %v1383 = vadd.f32 0.0, %v1382
    %v1384 = vpop.f32.mrf.mxu0
    %v1385 = vpop.f32.mrf.mxu0
    %v1386 = vadd.f32 0.0, %v1385
    %v1387 = vpop.f32.mrf.mxu0
    %1388 = vmatprep.mubr.bf16.mxu0 0
    %1389 = vmatmul.mubr.bf16.gmra.mxu0 %v1313
    %v1390 = vpop.f32.mrf.mxu0
    %v1391 = vadd.f32 0.0, %v1390
    %v1392 = vpop.f32.mrf.mxu0
    %v1393 = vpop.f32.mrf.mxu0
    %v1394 = vadd.f32 0.0, %v1393
    %v1395 = vpop.f32.mrf.mxu0
    %1396 = vmatprep.mubr.bf16.mxu0 0
    %1397 = vmatmul.mubr.bf16.gmra.mxu0 %v1316
    %v1398 = vpop.f32.mrf.mxu0
    %v1399 = vadd.f32 0.0, %v1398
    %v1400 = vpop.f32.mrf.mxu0
    %v1401 = vpop.f32.mrf.mxu0
    %v1402 = vadd.f32 0.0, %v1401
    %v1403 = vpop.f32.mrf.mxu0
    %1404 = vmatprep.mubr.bf16.mxu0 0
    %1405 = vmatmul.mubr.bf16.gmra.mxu0 %v1319
    %v1406 = vpop.f32.mrf.mxu0
    %v1407 = vadd.f32 0.0, %v1406
    %v1408 = vpop.f32.mrf.mxu0
    %v1409 = vpop.f32.mrf.mxu0
    %v1410 = vadd.f32 0.0, %v1409
    %v1411 = vpop.f32.mrf.mxu0
    %1412 = vmatprep.mubr.bf16.mxu0 0
    %1413 = vmatmul.mubr.bf16.gmra.mxu0 %v1322
    %v1414 = vpop.f32.mrf.mxu0
    %v1415 = vadd.f32 0.0, %v1414
    %v1416 = vpop.f32.mrf.mxu0
    %v1417 = vpop.f32.mrf.mxu0
    %v1418 = vadd.f32 0.0, %v1417
    %v1419 = vpop.f32.mrf.mxu0
    %1420 = vmatprep.mubr.bf16.mxu0 0
    %1421 = vmatmul.mubr.bf16.gmra.mxu0 %v1325
    %v1422 = vpop.f32.mrf.mxu0
    %v1423 = vadd.f32 0.0, %v1422
    %v1424 = vpop.f32.mrf.mxu0
    %v1425 = vpop.f32.mrf.mxu0
    %v1426 = vadd.f32 0.0, %v1425
    %v1427 = vpop.f32.mrf.mxu0
    %1428 = vmatprep.mubr.bf16.mxu0 0
    %1429 = vmatmul.mubr.bf16.gmra.mxu0 %v1328
    %v1430 = vpop.f32.mrf.mxu0
    %v1431 = vadd.f32 0.0, %v1430
    %v1432 = vpop.f32.mrf.mxu0
    %v1433 = vpop.f32.mrf.mxu0
    %v1434 = vadd.f32 0.0, %v1433
    %v1435 = vpop.f32.mrf.mxu0
    %1436 = vmatprep.mubr.bf16.mxu0 0
    %1437 = vmatmul.mubr.bf16.gmra.mxu0 %v1331
    %v1438 = vpop.f32.mrf.mxu0
    %v1439 = vadd.f32 0.0, %v1438
    %v1440 = vpop.f32.mrf.mxu0
    %v1441 = vpop.f32.mrf.mxu0
    %v1442 = vadd.f32 0.0, %v1441
    %v1443 = vpop.f32.mrf.mxu0
    %1444 = vmatprep.mubr.bf16.mxu0 0
    %1445 = vmatmul.mubr.bf16.gmra.mxu0 %v1334
    %v1446 = vpop.f32.mrf.mxu0
    %v1447 = vadd.f32 0.0, %v1446
    %v1448 = vpop.f32.mrf.mxu0
    %v1449 = vpop.f32.mrf.mxu0
    %v1450 = vadd.f32 0.0, %v1449
    %v1451 = vpop.f32.mrf.mxu0
    %1452 = vmatprep.mubr.bf16.mxu0 0
    %1453 = vmatmul.mubr.bf16.gmra.mxu0 %v1337
    %v1454 = vpop.f32.mrf.mxu0
    %v1455 = vadd.f32 0.0, %v1454
    %v1456 = vpop.f32.mrf.mxu0
    %v1457 = vpop.f32.mrf.mxu0
    %v1458 = vadd.f32 0.0, %v1457
    %v1459 = vpop.f32.mrf.mxu0
    %1460 = vmatprep.mubr.bf16.mxu0 0
    %1461 = vmatmul.mubr.bf16.gmra.mxu0 %v1340
    %v1462 = vpop.f32.mrf.mxu0
    %v1463 = vadd.f32 0.0, %v1462
    %v1464 = vpop.f32.mrf.mxu0
    %v1465 = vpop.f32.mrf.mxu0
    %v1466 = vadd.f32 0.0, %v1465
    %v1467 = vpop.f32.mrf.mxu0
    %1468 = vmatprep.mubr.bf16.mxu0 0
    %1469 = vmatmul.mubr.bf16.gmra.mxu0 %v1343
    %v1470 = vpop.f32.mrf.mxu0
    %v1471 = vadd.f32 0.0, %v1470
    %v1472 = vpop.f32.mrf.mxu0
    %v1473 = vpop.f32.mrf.mxu0
    %v1474 = vadd.f32 0.0, %v1473
    %v1475 = vpop.f32.mrf.mxu0
    %1476 = vmatprep.mubr.bf16.mxu0 0
    %1477 = vmatmul.mubr.bf16.gmra.mxu0 %v1346
    %v1478 = vpop.f32.mrf.mxu0
    %v1479 = vadd.f32 0.0, %v1478
    %v1480 = vpop.f32.mrf.mxu0
    %v1481 = vpop.f32.mrf.mxu0
    %v1482 = vpop.f32.mrf.mxu0
    %1483 = vdwg.mxu0
    %v1484 = vrcp.pop %v1383
    %v1485 = vrcp.pop %v1386
    %v1486 = vrcp.pop %v1391
    %v1487 = vrcp.pop %v1394
    %v1488 = vrcp.pop %v1399
    %v1489 = vrcp.pop %v1402
    %v1490 = vrcp.pop %v1407
    %v1491 = vrcp.pop %v1410
    %v1492 = vrcp.pop %v1415
    %v1493 = vrcp.pop %v1418
    %v1494 = vrcp.pop %v1423
    %v1495 = vrcp.pop %v1426
    %v1496 = vrcp.pop %v1431
    %v1497 = vrcp.pop %v1434
    %v1498 = vrcp.pop %v1439
    %v1499 = vrcp.pop %v1442
    %v1500 = vrcp.pop %v1447
    %v1501 = vrcp.pop %v1450
    %v1502 = vrcp.pop %v1455
    %v1503 = vrcp.pop %v1458
    %v1504 = vrcp.pop %v1463
    %v1505 = vrcp.pop %v1466
    %v1506 = vrcp.pop %v1471
    %v1507 = vrcp.pop %v1474
    %v1508 = vrcp.pop %v1479
    %v1509 = vmul.f32 %v1215, %v1484
    %v1510 = vmul.f32 %v1217, %v1485
    %v1511 = vmul.f32 %v1219, %v1486
    %v1512 = vmul.f32 %v1221, %v1487
    %v1513 = vmul.f32 %v1223, %v1488
    %v1514 = vmul.f32 %v1225, %v1489
    %v1515 = vmul.f32 %v1227, %v1490
    %v1516 = vmul.f32 %v1229, %v1491
    %v1517 = vmul.f32 %v1231, %v1492
    %v1518 = vmul.f32 %v1233, %v1493
    %v1519 = vmul.f32 %v1235, %v1494
    %v1520 = vmul.f32 %v1237, %v1495
    %v1521 = vmul.f32 %v1239, %v1496
    %v1522 = vmul.f32 %v1241, %v1497
    %v1523 = vmul.f32 %v1243, %v1498
    %v1524 = vmul.f32 %v1245, %v1499
    %v1525 = vmul.f32 %v1247, %v1500
    %v1526 = vmul.f32 %v1249, %v1501
    %v1527 = vmul.f32 %v1251, %v1502
    %v1528 = vmul.f32 %v1253, %v1503
    %v1529 = vmul.f32 %v1255, %v1504
    %v1530 = vmul.f32 %v1257, %v1505
    %v1531 = vmul.f32 %v1259, %v1506
    %v1532 = vmul.f32 %v1261, %v1507
    %v1533 = vmul.f32 %v1263, %v1508
    %v1534 = vpack.c.bf16 %v1510, %v1509
    %v1535 = vpack.c.bf16 %v1512, %v1511
    %v1536 = vpack.c.bf16 %v1514, %v1513
    %v1537 = vpack.c.bf16 %v1516, %v1515
    %v1538 = vpack.c.bf16 %v1518, %v1517
    %v1539 = vpack.c.bf16 %v1520, %v1519
    %v1540 = vpack.c.bf16 %v1522, %v1521
    %v1541 = vpack.c.bf16 %v1524, %v1523
    %v1542 = vpack.c.bf16 %v1526, %v1525
    %v1543 = vpack.c.bf16 %v1528, %v1527
    %v1544 = vpack.c.bf16 %v1530, %v1529
    %v1545 = vpack.c.bf16 %v1532, %v1531
    %v1546 = vpack.c.bf16 %v1533, %v1533
    %v1548 = vsel %vm1112, %v1534, 0
    %v1551 = vsel %vm1112, %v1535, 0
    %v1554 = vsel %vm1112, %v1536, 0
    %v1557 = vsel %vm1112, %v1537, 0
    %v1560 = vsel %vm1112, %v1538, 0
    %v1563 = vsel %vm1112, %v1539, 0
    %v1566 = vsel %vm1112, %v1540, 0
    %v1569 = vsel %vm1112, %v1541, 0
    %v1572 = vsel %vm1112, %v1542, 0
    %v1575 = vsel %vm1112, %v1543, 0
    %v1578 = vsel %vm1112, %v1544, 0
    %v1581 = vsel %vm1112, %v1545, 0
    %v1584 = vsel %vm1112, %v1546, 0
    %1586 = vmatprep.subr.bf16.mxu0 0
    %1587 = vmatpush1.bf16.msra.mxu0 0
    %1588 = vmatprep.subr.bf16.mxu0 0
    %1589 = vmatpush1.bf16.msra.mxu0 0
    %1590 = vmatprep.subr.bf16.mxu0 0
    %1591 = vmatpush1.bf16.msra.mxu0 0
    %1592 = vmatprep.subr.bf16.mxu0 0
    %1593 = vmatpush1.bf16.msra.mxu0 0
    %1594 = vmatprep.subr.bf16.mxu0 0
    %1595 = vmatpush1.bf16.msra.mxu0 %v962
    %1596 = vmatprep.subr.bf16.mxu0 0
    %1597 = vmatpush1.bf16.msra.mxu0 %v961
    %1598 = vmatprep.subr.bf16.mxu0 0
    %1599 = vmatpush1.bf16.msra.mxu0 %v960
    %1600 = vmatprep.subr.bf16.mxu0 0
    %1601 = vmatpush1.bf16.msra.mxu0 %v959
    %1602 = vmatprep.subr.bf16.mxu0 0
    %1603 = vmatpush2.bf16.msra.mxu0 0
    %1604 = vmatprep.subr.bf16.mxu0 0
    %1605 = vmatpush2.bf16.msra.mxu0 0
    %1606 = vmatprep.subr.bf16.mxu0 0
    %1607 = vmatpush2.bf16.msra.mxu0 0
    %1608 = vmatprep.subr.bf16.mxu0 0
    %1609 = vmatpush2.bf16.msra.mxu0 0
    %1610 = vmatprep.subr.bf16.mxu0 0
    %1611 = vmatpush2.bf16.msra.mxu0 0
    %1612 = vmatprep.subr.bf16.mxu0 0
    %1613 = vmatpush2.bf16.msra.mxu0 0
    %1614 = vmatprep.subr.bf16.mxu0 0
    %1615 = vmatpush2.bf16.msra.mxu0 0
    %1616 = vmatprep.subr.bf16.mxu0 0
    %1617 = vmatpush2.bf16.msra.mxu0 0
    %1618 = vmatprep.mubr.bf16.mxu0 0
    %1619 = vmatmul.mubr.bf16.gmra.mxu0 %v1548
    %v1620 = vpop.f32.mrf.mxu0
    %v1621 = vadd.f32 0.0, %v1620
    %v1622 = vpop.f32.mrf.mxu0
    %v1623 = vpop.f32.mrf.mxu0
    %v1624 = vadd.f32 0.0, %v1623
    %v1625 = vpop.f32.mrf.mxu0
    %1626 = vmatprep.mubr.bf16.mxu0 0
    %1627 = vmatmul.mubr.bf16.gmra.mxu0 %v1551
    %v1628 = vpop.f32.mrf.mxu0
    %v1629 = vadd.f32 0.0, %v1628
    %v1630 = vpop.f32.mrf.mxu0
    %v1631 = vpop.f32.mrf.mxu0
    %v1632 = vadd.f32 0.0, %v1631
    %v1633 = vpop.f32.mrf.mxu0
    %1634 = vmatprep.mubr.bf16.mxu0 0
    %1635 = vmatmul.mubr.bf16.gmra.mxu0 %v1554
    %v1636 = vpop.f32.mrf.mxu0
    %v1637 = vadd.f32 0.0, %v1636
    %v1638 = vpop.f32.mrf.mxu0
    %v1639 = vpop.f32.mrf.mxu0
    %v1640 = vadd.f32 0.0, %v1639
    %v1641 = vpop.f32.mrf.mxu0
    %1642 = vmatprep.mubr.bf16.mxu0 0
    %1643 = vmatmul.mubr.bf16.gmra.mxu0 %v1557
    %v1644 = vpop.f32.mrf.mxu0
    %v1645 = vadd.f32 0.0, %v1644
    %v1646 = vpop.f32.mrf.mxu0
    %v1647 = vpop.f32.mrf.mxu0
    %v1648 = vadd.f32 0.0, %v1647
    %v1649 = vpop.f32.mrf.mxu0
    %1650 = vmatprep.mubr.bf16.mxu0 0
    %1651 = vmatmul.mubr.bf16.gmra.mxu0 %v1560
    %v1652 = vpop.f32.mrf.mxu0
    %v1653 = vadd.f32 0.0, %v1652
    %v1654 = vpop.f32.mrf.mxu0
    %v1655 = vpop.f32.mrf.mxu0
    %v1656 = vadd.f32 0.0, %v1655
    %v1657 = vpop.f32.mrf.mxu0
    %1658 = vmatprep.mubr.bf16.mxu0 0
    %1659 = vmatmul.mubr.bf16.gmra.mxu0 %v1563
    %v1660 = vpop.f32.mrf.mxu0
    %v1661 = vadd.f32 0.0, %v1660
    %v1662 = vpop.f32.mrf.mxu0
    %v1663 = vpop.f32.mrf.mxu0
    %v1664 = vadd.f32 0.0, %v1663
    %v1665 = vpop.f32.mrf.mxu0
    %1666 = vmatprep.mubr.bf16.mxu0 0
    %1667 = vmatmul.mubr.bf16.gmra.mxu0 %v1566
    %v1668 = vpop.f32.mrf.mxu0
    %v1669 = vadd.f32 0.0, %v1668
    %v1670 = vpop.f32.mrf.mxu0
    %v1671 = vpop.f32.mrf.mxu0
    %v1672 = vadd.f32 0.0, %v1671
    %v1673 = vpop.f32.mrf.mxu0
    %1674 = vmatprep.mubr.bf16.mxu0 0
    %1675 = vmatmul.mubr.bf16.gmra.mxu0 %v1569
    %v1676 = vpop.f32.mrf.mxu0
    %v1677 = vadd.f32 0.0, %v1676
    %v1678 = vpop.f32.mrf.mxu0
    %v1679 = vpop.f32.mrf.mxu0
    %v1680 = vadd.f32 0.0, %v1679
    %v1681 = vpop.f32.mrf.mxu0
    %1682 = vmatprep.mubr.bf16.mxu0 0
    %1683 = vmatmul.mubr.bf16.gmra.mxu0 %v1572
    %v1684 = vpop.f32.mrf.mxu0
    %v1685 = vadd.f32 0.0, %v1684
    %v1686 = vpop.f32.mrf.mxu0
    %v1687 = vpop.f32.mrf.mxu0
    %v1688 = vadd.f32 0.0, %v1687
    %v1689 = vpop.f32.mrf.mxu0
    %1690 = vmatprep.mubr.bf16.mxu0 0
    %1691 = vmatmul.mubr.bf16.gmra.mxu0 %v1575
    %v1692 = vpop.f32.mrf.mxu0
    %v1693 = vadd.f32 0.0, %v1692
    %v1694 = vpop.f32.mrf.mxu0
    %v1695 = vpop.f32.mrf.mxu0
    %v1696 = vadd.f32 0.0, %v1695
    %v1697 = vpop.f32.mrf.mxu0
    %1698 = vmatprep.mubr.bf16.mxu0 0
    %1699 = vmatmul.mubr.bf16.gmra.mxu0 %v1578
    %v1700 = vpop.f32.mrf.mxu0
    %v1701 = vadd.f32 0.0, %v1700
    %v1702 = vpop.f32.mrf.mxu0
    %v1703 = vpop.f32.mrf.mxu0
    %v1704 = vadd.f32 0.0, %v1703
    %v1705 = vpop.f32.mrf.mxu0
    %1706 = vmatprep.mubr.bf16.mxu0 0
    %1707 = vmatmul.mubr.bf16.gmra.mxu0 %v1581
    %v1708 = vpop.f32.mrf.mxu0
    %v1709 = vadd.f32 0.0, %v1708
    %v1710 = vpop.f32.mrf.mxu0
    %v1711 = vpop.f32.mrf.mxu0
    %v1712 = vadd.f32 0.0, %v1711
    %v1713 = vpop.f32.mrf.mxu0
    %1714 = vmatprep.mubr.bf16.mxu0 0
    %1715 = vmatmul.mubr.bf16.gmra.mxu0 %v1584
    %v1716 = vpop.f32.mrf.mxu0
    %v1717 = vadd.f32 0.0, %v1716
    %v1718 = vpop.f32.mrf.mxu0
    %v1719 = vpop.f32.mrf.mxu0
    %v1720 = vpop.f32.mrf.mxu0
    %1721 = vdwg.mxu0
    %1722 = vst [vmem:[#allocation16] sm:$0xff] %v1621
    %1723 = vst [vmem:[#allocation16 + $0x8] sm:$0xff] %v1624
    %1724 = vst [vmem:[#allocation16 + $0x10] sm:$0xff] %v1629
    %1725 = vst [vmem:[#allocation16 + $0x18] sm:$0xff] %v1632
    %1726 = vst [vmem:[#allocation16 + $0x20] sm:$0xff] %v1637
    %1727 = vst [vmem:[#allocation16 + $0x28] sm:$0xff] %v1640
    %1728 = vst [vmem:[#allocation16 + $0x30] sm:$0xff] %v1645
    %1729 = vst [vmem:[#allocation16 + $0x38] sm:$0xff] %v1648
    %1730 = vst [vmem:[#allocation16 + $0x40] sm:$0xff] %v1653
    %1731 = vst [vmem:[#allocation16 + $0x48] sm:$0xff] %v1656
    %1732 = vst [vmem:[#allocation16 + $0x50] sm:$0xff] %v1661
    %1733 = vst [vmem:[#allocation16 + $0x58] sm:$0xff] %v1664
    %1734 = vst [vmem:[#allocation16 + $0x60] sm:$0xff] %v1669
    %1735 = vst [vmem:[#allocation16 + $0x68] sm:$0xff] %v1672
    %1736 = vst [vmem:[#allocation16 + $0x70] sm:$0xff] %v1677
    %1737 = vst [vmem:[#allocation16 + $0x78] sm:$0xff] %v1680
    %1738 = vst [vmem:[#allocation16 + $0x80] sm:$0xff] %v1685
    %1739 = vst [vmem:[#allocation16 + $0x88] sm:$0xff] %v1688
    %1740 = vst [vmem:[#allocation16 + $0x90] sm:$0xff] %v1693
    %1741 = vst [vmem:[#allocation16 + $0x98] sm:$0xff] %v1696
    %1742 = vst [vmem:[#allocation16 + $0xa0] sm:$0xff] %v1701
    %1743 = vst [vmem:[#allocation16 + $0xa8] sm:$0xff] %v1704
    %1744 = vst [vmem:[#allocation16 + $0xb0] sm:$0xff] %v1709
    %1745 = vst [vmem:[#allocation16 + $0xb8] sm:$0xff] %v1712
    %1746 = vst [vmem:[#allocation16 + $0xc0] sm:$0xf] %v1717
    // Predicated region
    $region86: #{tpu_custom_call.1} parent=1 // pred_check
      _
    $region87: #{tpu_custom_call.1} parent=1 // pred_check_branch
      %1748 = sbr.rel (0) target = $region89
    $region88: #{tpu_custom_call.1} parent=1 // pred_region
      %s1750 = ssub.s32 3200, 3200
      %1751 = vsyncadd [#allocation4], %s1750
      %s1752 = sshll.u32 [#allocation16], 4
      %s1753 = int_to_ptr.vmem [resolvable:$true] %s1752
      %1758 = dma.vmem_to_hbm [thread:$0]  %s1753, 3200, %s13, [#allocation4], 128, 128, 8
    $region89: #{tpu_custom_call.1} parent=1 // pred_fallthru
      _
    // Predicated region
    $region90: #{tpu_custom_call.1} parent=1 // pred_check
      _
    $region91: #{tpu_custom_call.1} parent=1 // pred_check_branch
      %1760 = sbr.rel (0) target = $region93
    $region92: #{tpu_custom_call.1} parent=1 // pred_region
      %1761 = dma.done [#allocation4], 3200
    $region93: #{tpu_custom_call.1} parent=1 // pred_fallthru
      _
    %1762 = vsyncpa [#allocation3], 1
    %1763 = vsyncpa [#allocation6], 1
    %1764 = vsyncpa [#allocation9], 1
    %1765 = vsyncpa [#allocation12], 1
    %1766 = vsyncpa [#allocation15], 1
    %1767 = vsyncpa [#allocation4], 1

</llo_original>
